<compile_context>
chip_gen: v6e
topology: v6e:2x2x1
jax: 0.10.0
libtpu: 0.0.40
codegen_flags: <defaults>
</compile_context>

<pallas_src>
import math

import jax
import jax.numpy as jnp
from jax.experimental import pallas as pl
from jax.experimental.pallas import tpu as pltpu


def _ceil_to(v, m):
    return ((v + m - 1) // m) * m


def _hdot(a, b):
    # Full-f32 reference / composition matmuls (avoid XLA's default bf16 demotion).
    return jnp.dot(a, b, precision=jax.lax.Precision.HIGHEST)


# ------------------------------ fused kernel --------------------------------
def make_lstm_kernel(L, T, Bp, H, Hq):
    """Whole forward pass in one gridless kernel (everything resident in VMEM)."""
    G = 4 * Hq  # packed gate width (i|f|g|o), multiple of 128

    def kernel(*refs):
        x_ref = refs[0]                       # (T*Bp, D_PAD)
        layer_refs = refs[1:1 + 3 * L]        # per layer: w_in (K,G), w_hh (G,G), b (1,G)
        wh_ref = refs[1 + 3 * L]              # (G, OUT_PAD)  pre-composed affine head
        bh_ref = refs[2 + 3 * L]              # (1, OUT_PAD)
        out_ref = refs[3 + 3 * L]             # (Bp, OUT_PAD)
        f32 = jnp.float32

        # Hoisted lane constants: all four gate activations in one EUP tanh pass.
        #   sigmoid(x) = 0.5 * tanh(0.5 * x) + 0.5   (i, f, o lanes)
        #   tanh(x)                                   (g lanes)
        lane = jax.lax.broadcasted_iota(jnp.int32, (Bp, G), 1)
        is_g = (lane >= 2 * Hq) & (lane < 3 * Hq)
        scale = jnp.where(is_g, 1.0, 0.5).astype(f32)      # pre- and post-scale
        shift = jnp.where(is_g, 0.0, 0.5).astype(f32)

        def cell(gates, c_prev):
            a = jnp.tanh(gates * scale) * scale + shift     # (Bp, G), all four gates
            f_a = pltpu.roll(a, shift=G - Hq, axis=1)       # f block -> lanes [0, Hq)
            g_a = pltpu.roll(a, shift=G - 2 * Hq, axis=1)   # g block -> lanes [0, Hq)
            o_a = pltpu.roll(a, shift=G - 3 * Hq, axis=1)   # o block -> lanes [0, Hq)
            c_new = f_a * c_prev + a * g_a                  # i already at lanes [0, Hq)
            h_new = o_a * jnp.tanh(c_new)
            # Lanes >= H of h/c hold bounded garbage (rolled copies); every
            # consumer matmul has zero weight rows there, so it never leaks.
            return h_new, c_new

        # Layer 0: time-parallel input projection hoisted out of the recurrence
        # (one MXU matmul over all T timesteps), bias folded in.
        xproj0 = jnp.dot(x_ref[...], layer_refs[0][...],
                         preferred_element_type=f32) + layer_refs[2][...]   # (T*Bp, G)

        b_up = [layer_refs[3 * l + 2][...] for l in range(1, L)]  # hoisted biases

        h = [jnp.zeros((Bp, G), f32) for _ in range(L)]
        c = [jnp.zeros((Bp, G), f32) for _ in range(L)]

        # Time-major wavefront, fully unrolled: layer l @ step t depends only on
        # (layer l-1 @ step t, layer l @ step t-1) -> dependent chain T + L - 1.
        # h/c stay in vregs; weights are re-read from VMEM refs each step so the
        # (G,G) weight values are not pinned live across the unrolled loop.
        for t in range(T):
            gates0 = xproj0[t * Bp:(t + 1) * Bp, :] + jnp.dot(
                h[0], layer_refs[1][...], preferred_element_type=f32)
            h[0], c[0] = cell(gates0, c[0])
            for l in range(1, L):
                gates = (jnp.dot(h[l - 1], layer_refs[3 * l][...],
                                 preferred_element_type=f32)
                         + jnp.dot(h[l], layer_refs[3 * l + 1][...],
                                   preferred_element_type=f32)
                         + b_up[l - 1])
                h[l], c[l] = cell(gates, c[l])

        # Pre-composed affine head (all Linear layers + fc) on the final hidden
        # state of the top layer; lane-dense 128-wide store.
        out_ref[...] = (jnp.dot(h[L - 1], wh_ref[...], preferred_element_type=f32)
                        + bh_ref[...]).astype(out_ref.dtype)

    return kernel


# ------------------- one-time weight preparation (cached) -------------------
def _gate_cols(w_t, rows_pad, H, Hq):
    """(rows, 4H) -> (rows_pad, 4*Hq); gate blocks at offsets g*Hq, zero padded."""
    rows = w_t.shape[0]
    out = jnp.zeros((rows_pad, 4 * Hq), jnp.float32)
    for g in range(4):
        out = out.at[:rows, g * Hq:g * Hq + H].set(w_t[:, g * H:(g + 1) * H])
    return out


def _gate_bias(b, H, Hq):
    out = jnp.zeros((1, 4 * Hq), jnp.float32)
    for g in range(4):
        out = out.at[0, g * Hq:g * Hq + H].set(b[g * H:(g + 1) * H])
    return out


def prepare_params(input_size, lstm_params, head_params):
    H = lstm_params[0][1].shape[1]            # w_hh: (4H, H)
    Hq = _ceil_to(H, 32)
    G = 4 * Hq
    # TODO(synk): fall back to per-gate 128-lane padding when 4*ceil(H,32) % 128 != 0.
    assert G % 128 == 0, "packed-gate kernel needs 4*ceil(H,32) to be a multiple of 128"
    D_PAD = _ceil_to(input_size, 128)
    out_dim = head_params[-1][0].shape[0]
    OUT_PAD = _ceil_to(out_dim, 128)

    args = []
    for l, (w_ih, w_hh, b) in enumerate(lstm_params):
        rows_pad = D_PAD if l == 0 else G     # layer>0 input is h_{l-1}, width G
        args.append(_gate_cols(w_ih.T.astype(jnp.float32), rows_pad, H, Hq))
        args.append(_gate_cols(w_hh.T.astype(jnp.float32), G, H, Hq))
        args.append(_gate_bias(b.astype(jnp.float32), H, Hq))

    # Compose the purely-affine head (Linear stack + fc) into one matmul + bias.
    W, bvec = None, None
    for (w, bb) in head_params:
        wt = w.T.astype(jnp.float32)
        bl = bb.astype(jnp.float32)
        if W is None:
            W, bvec = wt, bl
        else:
            W = _hdot(W, wt)
            bvec = _hdot(bvec, wt) + bl
    Wp = jnp.zeros((G, OUT_PAD), jnp.float32).at[:H, :out_dim].set(W)
    bp = jnp.zeros((1, OUT_PAD), jnp.float32).at[0, :out_dim].set(bvec)
    args += [Wp, bp]

    meta = dict(L=len(lstm_params), H=H, Hq=Hq, D_PAD=D_PAD,
                OUT_PAD=OUT_PAD, out_dim=out_dim)
    return tuple(args), meta


def build_forward(input_size, lstm_params, head_params):
    prepared, m = prepare_params(input_size, lstm_params, head_params)
    L, H, Hq = m["L"], m["H"], m["Hq"]
    D_PAD, OUT_PAD, out_dim = m["D_PAD"], m["OUT_PAD"], m["out_dim"]
    n_in = 1 + len(prepared)

    @jax.jit
    def forward(x):
        B, T, D = x.shape
        Bp = _ceil_to(B, 8)
        # Tiny per-call prep (fused by XLA): time-major, pad batch to a sublane
        # multiple and features to 128 lanes, flatten to (T*Bp, D_PAD).
        x_tm = jnp.transpose(x.astype(jnp.float32), (1, 0, 2))
        x_tm = jnp.pad(x_tm, ((0, 0), (0, Bp - B), (0, D_PAD - D)))
        x2d = x_tm.reshape(T * Bp, D_PAD)

        out = pl.pallas_call(
            make_lstm_kernel(L, T, Bp, H, Hq),
            out_shape=jax.ShapeDtypeStruct((Bp, OUT_PAD), jnp.float32),
            in_specs=[pl.BlockSpec(memory_space=pltpu.MemorySpace.VMEM)] * n_in,
            out_specs=pl.BlockSpec(memory_space=pltpu.MemorySpace.VMEM),
        )(x2d, *prepared)
        return out[:B, :out_dim]

    return forward


# ------------------------------ Parameters ----------------------------------
def init_params(key, input_size, lstm_hidden_size, linear_hidden_size,
                lstm_num_layers, linear_num_layers, output_size):
    H = lstm_hidden_size
    lstm_params = []
    bound = 1.0 / math.sqrt(H)
    for l in range(lstm_num_layers):
        d_in = input_size if l == 0 else H
        key, k1, k2, k3, k4 = jax.random.split(key, 5)
        w_ih = jax.random.uniform(k1, (4 * H, d_in), jnp.float32, -bound, bound)
        w_hh = jax.random.uniform(k2, (4 * H, H), jnp.float32, -bound, bound)
        b_ih = jax.random.uniform(k3, (4 * H,), jnp.float32, -bound, bound)
        b_hh = jax.random.uniform(k4, (4 * H,), jnp.float32, -bound, bound)
        lstm_params.append((w_ih, w_hh, b_ih + b_hh))

    # Mirrors the module's __init__: 1 + linear_num_layers Linear layers, then fc.
    hs = linear_hidden_size
    layer_dims = [(H, hs)]
    for _ in range(linear_num_layers):
        layer_dims.append((hs, int(hs / 1.5)))
        hs = int(hs / 1.5)
    layer_dims.append((hs, output_size))                  # fc

    head_params = []
    for (din, dout) in layer_dims:
        key, k1, k2 = jax.random.split(key, 3)
        b_lin = 1.0 / math.sqrt(din)
        w = jax.random.uniform(k1, (dout, din), jnp.float32, -b_lin, b_lin)
        b = jax.random.uniform(k2, (dout,), jnp.float32, -b_lin, b_lin)
        head_params.append((w, b))
    return lstm_params, head_params


# ------------------------------- Reference ----------------------------------
def ref_forward(x, lstm_params, head_params):
    B, T, _ = x.shape
    H = lstm_params[0][1].shape[1]
    layer_in = x.astype(jnp.float32)
    for (w_ih, w_hh, b) in lstm_params:
        h = jnp.zeros((B, H), jnp.float32)
        c = jnp.zeros((B, H), jnp.float32)
        outs = []
        for t in range(T):
            gates = _hdot(layer_in[:, t], w_ih.T) + _hdot(h, w_hh.T) + b
            i = jax.nn.sigmoid(gates[:, :H])
            f = jax.nn.sigmoid(gates[:, H:2 * H])
            g = jnp.tanh(gates[:, 2 * H:3 * H])
            o = jax.nn.sigmoid(gates[:, 3 * H:])
            c = f * c + i * g
            h = o * jnp.tanh(c)
            outs.append(h)
        layer_in = jnp.stack(outs, axis=1)
    out = layer_in[:, -1, :]
    for (w, b) in head_params:                            # affine head (no activations)
        out = _hdot(out, w.T) + b
    return out


# --------------------------------- Main --------------------------------------
if __name__ == "__main__":
    B, T = 2, 8
    input_size = 4
    lstm_hidden_size = 32
    linear_hidden_size = 32
    lstm_num_layers = 2
    linear_num_layers = 2
    output_size = 1

    key = jax.random.PRNGKey(0)
    key, pkey, xkey = jax.random.split(key, 3)
    lstm_params, head_params = init_params(
        pkey, input_size, lstm_hidden_size, linear_hidden_size,
        lstm_num_layers, linear_num_layers, output_size)
    x = jax.random.normal(xkey, (B, T, input_size), jnp.float32)

    forward = build_forward(input_size, lstm_params, head_params)
    out = jax.block_until_ready(forward(x))
    ref = jax.block_until_ready(ref_forward(x, lstm_params, head_params))

    assert out.shape == (B, output_size), out.shape
    assert jnp.allclose(out, ref, atol=1e-4, rtol=1e-4), (out, ref)
    print("KERNEL_OK")
</pallas_src>

<mosaic_0001>
module attributes {stable_mosaic.version = 11 : i64} {
  func.func @kernel(%arg0: memref<64x128xf32, #tpu.memory_space<vmem>>, %arg1: memref<128x128xf32, #tpu.memory_space<vmem>>, %arg2: memref<128x128xf32, #tpu.memory_space<vmem>>, %arg3: memref<1x128xf32, #tpu.memory_space<vmem>>, %arg4: memref<128x128xf32, #tpu.memory_space<vmem>>, %arg5: memref<128x128xf32, #tpu.memory_space<vmem>>, %arg6: memref<1x128xf32, #tpu.memory_space<vmem>>, %arg7: memref<128x128xf32, #tpu.memory_space<vmem>>, %arg8: memref<1x128xf32, #tpu.memory_space<vmem>>, %arg9: memref<8x128xf32, #tpu.memory_space<vmem>>) attributes {dimension_semantics = [], scalar_prefetch = 0 : i64, scratch_operands = 0 : i64, tpu.core_type = #tpu.core_type<tc>} {
    %0 = tpu.iota {dimensions = array<i32: 1>} : vector<8x128xi32>
    %c64_i32 = arith.constant 64 : i32
    %1 = vector.broadcast %c64_i32 : i32 to vector<8x128xi32>
    %2 = arith.cmpi sge, %0, %1 : vector<8x128xi32>
    %c96_i32 = arith.constant 96 : i32
    %3 = vector.broadcast %c96_i32 : i32 to vector<8x128xi32>
    %4 = arith.cmpi slt, %0, %3 : vector<8x128xi32>
    %5 = arith.andi %2, %4 : vector<8x128xi1>
    %cst = arith.constant 1.000000e+00 : f32
    %cst_0 = arith.constant 5.000000e-01 : f32
    %6 = vector.broadcast %cst : f32 to vector<8x128xf32>
    %7 = vector.broadcast %cst_0 : f32 to vector<8x128xf32>
    %8 = arith.select %5, %6, %7 : vector<8x128xi1>, vector<8x128xf32>
    %cst_1 = arith.constant 0.000000e+00 : f32
    %cst_2 = arith.constant 5.000000e-01 : f32
    %9 = vector.broadcast %cst_1 : f32 to vector<8x128xf32>
    %10 = vector.broadcast %cst_2 : f32 to vector<8x128xf32>
    %11 = arith.select %5, %9, %10 : vector<8x128xi1>, vector<8x128xf32>
    %c0 = arith.constant 0 : index
    %c0_3 = arith.constant 0 : index
    %12 = vector.load %arg0[%c0, %c0_3] : memref<64x128xf32, #tpu.memory_space<vmem>>, vector<64x128xf32>
    %c0_4 = arith.constant 0 : index
    %c0_5 = arith.constant 0 : index
    %13 = vector.load %arg1[%c0_4, %c0_5] : memref<128x128xf32, #tpu.memory_space<vmem>>, vector<128x128xf32>
    %cst_6 = arith.constant dense<0.000000e+00> : vector<64x128xf32>
    %14 = tpu.matmul %12, %13, %cst_6 {dimension_numbers = #tpu.dot_dimension_numbers<[1], [0], [0], [1], [0, 0, 1, 1], [], []>} : vector<64x128xf32>, vector<128x128xf32>, vector<64x128xf32> -> vector<64x128xf32>
    %c0_7 = arith.constant 0 : index
    %c0_8 = arith.constant 0 : index
    %15 = vector.load %arg3[%c0_7, %c0_8] : memref<1x128xf32, #tpu.memory_space<vmem>>, vector<1x128xf32>
    %16 = vector.broadcast %15 : vector<1x128xf32> to vector<64x128xf32>
    %17 = arith.addf %14, %16 : vector<64x128xf32>
    %c0_9 = arith.constant 0 : index
    %c0_10 = arith.constant 0 : index
    %18 = vector.load %arg6[%c0_9, %c0_10] : memref<1x128xf32, #tpu.memory_space<vmem>>, vector<1x128xf32>
    %cst_11 = arith.constant 0.000000e+00 : f32
    %19 = vector.broadcast %cst_11 : f32 to vector<8x128xf32>
    %cst_12 = arith.constant 0.000000e+00 : f32
    %20 = vector.broadcast %cst_12 : f32 to vector<8x128xf32>
    %cst_13 = arith.constant 0.000000e+00 : f32
    %21 = vector.broadcast %cst_13 : f32 to vector<8x128xf32>
    %cst_14 = arith.constant 0.000000e+00 : f32
    %22 = vector.broadcast %cst_14 : f32 to vector<8x128xf32>
    %23 = vector.extract_strided_slice %17 {offsets = [0, 0], sizes = [8, 128], strides = [1, 1]} : vector<64x128xf32> to vector<8x128xf32>
    %c0_15 = arith.constant 0 : index
    %c0_16 = arith.constant 0 : index
    %24 = vector.load %arg2[%c0_15, %c0_16] : memref<128x128xf32, #tpu.memory_space<vmem>>, vector<128x128xf32>
    %cst_17 = arith.constant dense<0.000000e+00> : vector<8x128xf32>
    %25 = tpu.matmul %19, %24, %cst_17 {dimension_numbers = #tpu.dot_dimension_numbers<[1], [0], [0], [1], [0, 0, 1, 1], [], []>} : vector<8x128xf32>, vector<128x128xf32>, vector<8x128xf32> -> vector<8x128xf32>
    %26 = arith.addf %23, %25 : vector<8x128xf32>
    %27 = arith.mulf %26, %8 : vector<8x128xf32>
    %28 = math.tanh %27 : vector<8x128xf32>
    %29 = arith.mulf %28, %8 : vector<8x128xf32>
    %30 = arith.addf %29, %11 : vector<8x128xf32>
    %c96_i32_18 = arith.constant 96 : i32
    %31 = tpu.dynamic_rotate %30 by %c96_i32_18 dim 1 : vector<8x128xf32>, i32 -> vector<8x128xf32>
    %c64_i32_19 = arith.constant 64 : i32
    %32 = tpu.dynamic_rotate %30 by %c64_i32_19 dim 1 : vector<8x128xf32>, i32 -> vector<8x128xf32>
    %c32_i32 = arith.constant 32 : i32
    %33 = tpu.dynamic_rotate %30 by %c32_i32 dim 1 : vector<8x128xf32>, i32 -> vector<8x128xf32>
    %34 = arith.mulf %31, %21 : vector<8x128xf32>
    %35 = arith.mulf %30, %32 : vector<8x128xf32>
    %36 = arith.addf %34, %35 : vector<8x128xf32>
    %37 = math.tanh %36 : vector<8x128xf32>
    %38 = arith.mulf %33, %37 : vector<8x128xf32>
    %c0_20 = arith.constant 0 : index
    %c0_21 = arith.constant 0 : index
    %39 = vector.load %arg4[%c0_20, %c0_21] : memref<128x128xf32, #tpu.memory_space<vmem>>, vector<128x128xf32>
    %cst_22 = arith.constant dense<0.000000e+00> : vector<8x128xf32>
    %40 = tpu.matmul %38, %39, %cst_22 {dimension_numbers = #tpu.dot_dimension_numbers<[1], [0], [0], [1], [0, 0, 1, 1], [], []>} : vector<8x128xf32>, vector<128x128xf32>, vector<8x128xf32> -> vector<8x128xf32>
    %c0_23 = arith.constant 0 : index
    %c0_24 = arith.constant 0 : index
    %41 = vector.load %arg5[%c0_23, %c0_24] : memref<128x128xf32, #tpu.memory_space<vmem>>, vector<128x128xf32>
    %cst_25 = arith.constant dense<0.000000e+00> : vector<8x128xf32>
    %42 = tpu.matmul %20, %41, %cst_25 {dimension_numbers = #tpu.dot_dimension_numbers<[1], [0], [0], [1], [0, 0, 1, 1], [], []>} : vector<8x128xf32>, vector<128x128xf32>, vector<8x128xf32> -> vector<8x128xf32>
    %43 = arith.addf %40, %42 : vector<8x128xf32>
    %44 = vector.broadcast %18 : vector<1x128xf32> to vector<8x128xf32>
    %45 = arith.addf %43, %44 : vector<8x128xf32>
    %46 = arith.mulf %45, %8 : vector<8x128xf32>
    %47 = math.tanh %46 : vector<8x128xf32>
    %48 = arith.mulf %47, %8 : vector<8x128xf32>
    %49 = arith.addf %48, %11 : vector<8x128xf32>
    %c96_i32_26 = arith.constant 96 : i32
    %50 = tpu.dynamic_rotate %49 by %c96_i32_26 dim 1 : vector<8x128xf32>, i32 -> vector<8x128xf32>
    %c64_i32_27 = arith.constant 64 : i32
    %51 = tpu.dynamic_rotate %49 by %c64_i32_27 dim 1 : vector<8x128xf32>, i32 -> vector<8x128xf32>
    %c32_i32_28 = arith.constant 32 : i32
    %52 = tpu.dynamic_rotate %49 by %c32_i32_28 dim 1 : vector<8x128xf32>, i32 -> vector<8x128xf32>
    %53 = arith.mulf %50, %22 : vector<8x128xf32>
    %54 = arith.mulf %49, %51 : vector<8x128xf32>
    %55 = arith.addf %53, %54 : vector<8x128xf32>
    %56 = math.tanh %55 : vector<8x128xf32>
    %57 = arith.mulf %52, %56 : vector<8x128xf32>
    %58 = vector.extract_strided_slice %17 {offsets = [8, 0], sizes = [8, 128], strides = [1, 1]} : vector<64x128xf32> to vector<8x128xf32>
    %c0_29 = arith.constant 0 : index
    %c0_30 = arith.constant 0 : index
    %59 = vector.load %arg2[%c0_29, %c0_30] : memref<128x128xf32, #tpu.memory_space<vmem>>, vector<128x128xf32>
    %cst_31 = arith.constant dense<0.000000e+00> : vector<8x128xf32>
    %60 = tpu.matmul %38, %59, %cst_31 {dimension_numbers = #tpu.dot_dimension_numbers<[1], [0], [0], [1], [0, 0, 1, 1], [], []>} : vector<8x128xf32>, vector<128x128xf32>, vector<8x128xf32> -> vector<8x128xf32>
    %61 = arith.addf %58, %60 : vector<8x128xf32>
    %62 = arith.mulf %61, %8 : vector<8x128xf32>
    %63 = math.tanh %62 : vector<8x128xf32>
    %64 = arith.mulf %63, %8 : vector<8x128xf32>
    %65 = arith.addf %64, %11 : vector<8x128xf32>
    %c96_i32_32 = arith.constant 96 : i32
    %66 = tpu.dynamic_rotate %65 by %c96_i32_32 dim 1 : vector<8x128xf32>, i32 -> vector<8x128xf32>
    %c64_i32_33 = arith.constant 64 : i32
    %67 = tpu.dynamic_rotate %65 by %c64_i32_33 dim 1 : vector<8x128xf32>, i32 -> vector<8x128xf32>
    %c32_i32_34 = arith.constant 32 : i32
    %68 = tpu.dynamic_rotate %65 by %c32_i32_34 dim 1 : vector<8x128xf32>, i32 -> vector<8x128xf32>
    %69 = arith.mulf %66, %36 : vector<8x128xf32>
    %70 = arith.mulf %65, %67 : vector<8x128xf32>
    %71 = arith.addf %69, %70 : vector<8x128xf32>
    %72 = math.tanh %71 : vector<8x128xf32>
    %73 = arith.mulf %68, %72 : vector<8x128xf32>
    %c0_35 = arith.constant 0 : index
    %c0_36 = arith.constant 0 : index
    %74 = vector.load %arg4[%c0_35, %c0_36] : memref<128x128xf32, #tpu.memory_space<vmem>>, vector<128x128xf32>
    %cst_37 = arith.constant dense<0.000000e+00> : vector<8x128xf32>
    %75 = tpu.matmul %73, %74, %cst_37 {dimension_numbers = #tpu.dot_dimension_numbers<[1], [0], [0], [1], [0, 0, 1, 1], [], []>} : vector<8x128xf32>, vector<128x128xf32>, vector<8x128xf32> -> vector<8x128xf32>
    %c0_38 = arith.constant 0 : index
    %c0_39 = arith.constant 0 : index
    %76 = vector.load %arg5[%c0_38, %c0_39] : memref<128x128xf32, #tpu.memory_space<vmem>>, vector<128x128xf32>
    %cst_40 = arith.constant dense<0.000000e+00> : vector<8x128xf32>
    %77 = tpu.matmul %57, %76, %cst_40 {dimension_numbers = #tpu.dot_dimension_numbers<[1], [0], [0], [1], [0, 0, 1, 1], [], []>} : vector<8x128xf32>, vector<128x128xf32>, vector<8x128xf32> -> vector<8x128xf32>
    %78 = arith.addf %75, %77 : vector<8x128xf32>
    %79 = vector.broadcast %18 : vector<1x128xf32> to vector<8x128xf32>
    %80 = arith.addf %78, %79 : vector<8x128xf32>
    %81 = arith.mulf %80, %8 : vector<8x128xf32>
    %82 = math.tanh %81 : vector<8x128xf32>
    %83 = arith.mulf %82, %8 : vector<8x128xf32>
    %84 = arith.addf %83, %11 : vector<8x128xf32>
    %c96_i32_41 = arith.constant 96 : i32
    %85 = tpu.dynamic_rotate %84 by %c96_i32_41 dim 1 : vector<8x128xf32>, i32 -> vector<8x128xf32>
    %c64_i32_42 = arith.constant 64 : i32
    %86 = tpu.dynamic_rotate %84 by %c64_i32_42 dim 1 : vector<8x128xf32>, i32 -> vector<8x128xf32>
    %c32_i32_43 = arith.constant 32 : i32
    %87 = tpu.dynamic_rotate %84 by %c32_i32_43 dim 1 : vector<8x128xf32>, i32 -> vector<8x128xf32>
    %88 = arith.mulf %85, %55 : vector<8x128xf32>
    %89 = arith.mulf %84, %86 : vector<8x128xf32>
    %90 = arith.addf %88, %89 : vector<8x128xf32>
    %91 = math.tanh %90 : vector<8x128xf32>
    %92 = arith.mulf %87, %91 : vector<8x128xf32>
    %93 = vector.extract_strided_slice %17 {offsets = [16, 0], sizes = [8, 128], strides = [1, 1]} : vector<64x128xf32> to vector<8x128xf32>
    %c0_44 = arith.constant 0 : index
    %c0_45 = arith.constant 0 : index
    %94 = vector.load %arg2[%c0_44, %c0_45] : memref<128x128xf32, #tpu.memory_space<vmem>>, vector<128x128xf32>
    %cst_46 = arith.constant dense<0.000000e+00> : vector<8x128xf32>
    %95 = tpu.matmul %73, %94, %cst_46 {dimension_numbers = #tpu.dot_dimension_numbers<[1], [0], [0], [1], [0, 0, 1, 1], [], []>} : vector<8x128xf32>, vector<128x128xf32>, vector<8x128xf32> -> vector<8x128xf32>
    %96 = arith.addf %93, %95 : vector<8x128xf32>
    %97 = arith.mulf %96, %8 : vector<8x128xf32>
    %98 = math.tanh %97 : vector<8x128xf32>
    %99 = arith.mulf %98, %8 : vector<8x128xf32>
    %100 = arith.addf %99, %11 : vector<8x128xf32>
    %c96_i32_47 = arith.constant 96 : i32
    %101 = tpu.dynamic_rotate %100 by %c96_i32_47 dim 1 : vector<8x128xf32>, i32 -> vector<8x128xf32>
    %c64_i32_48 = arith.constant 64 : i32
    %102 = tpu.dynamic_rotate %100 by %c64_i32_48 dim 1 : vector<8x128xf32>, i32 -> vector<8x128xf32>
    %c32_i32_49 = arith.constant 32 : i32
    %103 = tpu.dynamic_rotate %100 by %c32_i32_49 dim 1 : vector<8x128xf32>, i32 -> vector<8x128xf32>
    %104 = arith.mulf %101, %71 : vector<8x128xf32>
    %105 = arith.mulf %100, %102 : vector<8x128xf32>
    %106 = arith.addf %104, %105 : vector<8x128xf32>
    %107 = math.tanh %106 : vector<8x128xf32>
    %108 = arith.mulf %103, %107 : vector<8x128xf32>
    %c0_50 = arith.constant 0 : index
    %c0_51 = arith.constant 0 : index
    %109 = vector.load %arg4[%c0_50, %c0_51] : memref<128x128xf32, #tpu.memory_space<vmem>>, vector<128x128xf32>
    %cst_52 = arith.constant dense<0.000000e+00> : vector<8x128xf32>
    %110 = tpu.matmul %108, %109, %cst_52 {dimension_numbers = #tpu.dot_dimension_numbers<[1], [0], [0], [1], [0, 0, 1, 1], [], []>} : vector<8x128xf32>, vector<128x128xf32>, vector<8x128xf32> -> vector<8x128xf32>
    %c0_53 = arith.constant 0 : index
    %c0_54 = arith.constant 0 : index
    %111 = vector.load %arg5[%c0_53, %c0_54] : memref<128x128xf32, #tpu.memory_space<vmem>>, vector<128x128xf32>
    %cst_55 = arith.constant dense<0.000000e+00> : vector<8x128xf32>
    %112 = tpu.matmul %92, %111, %cst_55 {dimension_numbers = #tpu.dot_dimension_numbers<[1], [0], [0], [1], [0, 0, 1, 1], [], []>} : vector<8x128xf32>, vector<128x128xf32>, vector<8x128xf32> -> vector<8x128xf32>
    %113 = arith.addf %110, %112 : vector<8x128xf32>
    %114 = vector.broadcast %18 : vector<1x128xf32> to vector<8x128xf32>
    %115 = arith.addf %113, %114 : vector<8x128xf32>
    %116 = arith.mulf %115, %8 : vector<8x128xf32>
    %117 = math.tanh %116 : vector<8x128xf32>
    %118 = arith.mulf %117, %8 : vector<8x128xf32>
    %119 = arith.addf %118, %11 : vector<8x128xf32>
    %c96_i32_56 = arith.constant 96 : i32
    %120 = tpu.dynamic_rotate %119 by %c96_i32_56 dim 1 : vector<8x128xf32>, i32 -> vector<8x128xf32>
    %c64_i32_57 = arith.constant 64 : i32
    %121 = tpu.dynamic_rotate %119 by %c64_i32_57 dim 1 : vector<8x128xf32>, i32 -> vector<8x128xf32>
    %c32_i32_58 = arith.constant 32 : i32
    %122 = tpu.dynamic_rotate %119 by %c32_i32_58 dim 1 : vector<8x128xf32>, i32 -> vector<8x128xf32>
    %123 = arith.mulf %120, %90 : vector<8x128xf32>
    %124 = arith.mulf %119, %121 : vector<8x128xf32>
    %125 = arith.addf %123, %124 : vector<8x128xf32>
    %126 = math.tanh %125 : vector<8x128xf32>
    %127 = arith.mulf %122, %126 : vector<8x128xf32>
    %128 = vector.extract_strided_slice %17 {offsets = [24, 0], sizes = [8, 128], strides = [1, 1]} : vector<64x128xf32> to vector<8x128xf32>
    %c0_59 = arith.constant 0 : index
    %c0_60 = arith.constant 0 : index
    %129 = vector.load %arg2[%c0_59, %c0_60] : memref<128x128xf32, #tpu.memory_space<vmem>>, vector<128x128xf32>
    %cst_61 = arith.constant dense<0.000000e+00> : vector<8x128xf32>
    %130 = tpu.matmul %108, %129, %cst_61 {dimension_numbers = #tpu.dot_dimension_numbers<[1], [0], [0], [1], [0, 0, 1, 1], [], []>} : vector<8x128xf32>, vector<128x128xf32>, vector<8x128xf32> -> vector<8x128xf32>
    %131 = arith.addf %128, %130 : vector<8x128xf32>
    %132 = arith.mulf %131, %8 : vector<8x128xf32>
    %133 = math.tanh %132 : vector<8x128xf32>
    %134 = arith.mulf %133, %8 : vector<8x128xf32>
    %135 = arith.addf %134, %11 : vector<8x128xf32>
    %c96_i32_62 = arith.constant 96 : i32
    %136 = tpu.dynamic_rotate %135 by %c96_i32_62 dim 1 : vector<8x128xf32>, i32 -> vector<8x128xf32>
    %c64_i32_63 = arith.constant 64 : i32
    %137 = tpu.dynamic_rotate %135 by %c64_i32_63 dim 1 : vector<8x128xf32>, i32 -> vector<8x128xf32>
    %c32_i32_64 = arith.constant 32 : i32
    %138 = tpu.dynamic_rotate %135 by %c32_i32_64 dim 1 : vector<8x128xf32>, i32 -> vector<8x128xf32>
    %139 = arith.mulf %136, %106 : vector<8x128xf32>
    %140 = arith.mulf %135, %137 : vector<8x128xf32>
    %141 = arith.addf %139, %140 : vector<8x128xf32>
    %142 = math.tanh %141 : vector<8x128xf32>
    %143 = arith.mulf %138, %142 : vector<8x128xf32>
    %c0_65 = arith.constant 0 : index
    %c0_66 = arith.constant 0 : index
    %144 = vector.load %arg4[%c0_65, %c0_66] : memref<128x128xf32, #tpu.memory_space<vmem>>, vector<128x128xf32>
    %cst_67 = arith.constant dense<0.000000e+00> : vector<8x128xf32>
    %145 = tpu.matmul %143, %144, %cst_67 {dimension_numbers = #tpu.dot_dimension_numbers<[1], [0], [0], [1], [0, 0, 1, 1], [], []>} : vector<8x128xf32>, vector<128x128xf32>, vector<8x128xf32> -> vector<8x128xf32>
    %c0_68 = arith.constant 0 : index
    %c0_69 = arith.constant 0 : index
    %146 = vector.load %arg5[%c0_68, %c0_69] : memref<128x128xf32, #tpu.memory_space<vmem>>, vector<128x128xf32>
    %cst_70 = arith.constant dense<0.000000e+00> : vector<8x128xf32>
    %147 = tpu.matmul %127, %146, %cst_70 {dimension_numbers = #tpu.dot_dimension_numbers<[1], [0], [0], [1], [0, 0, 1, 1], [], []>} : vector<8x128xf32>, vector<128x128xf32>, vector<8x128xf32> -> vector<8x128xf32>
    %148 = arith.addf %145, %147 : vector<8x128xf32>
    %149 = vector.broadcast %18 : vector<1x128xf32> to vector<8x128xf32>
    %150 = arith.addf %148, %149 : vector<8x128xf32>
    %151 = arith.mulf %150, %8 : vector<8x128xf32>
    %152 = math.tanh %151 : vector<8x128xf32>
    %153 = arith.mulf %152, %8 : vector<8x128xf32>
    %154 = arith.addf %153, %11 : vector<8x128xf32>
    %c96_i32_71 = arith.constant 96 : i32
    %155 = tpu.dynamic_rotate %154 by %c96_i32_71 dim 1 : vector<8x128xf32>, i32 -> vector<8x128xf32>
    %c64_i32_72 = arith.constant 64 : i32
    %156 = tpu.dynamic_rotate %154 by %c64_i32_72 dim 1 : vector<8x128xf32>, i32 -> vector<8x128xf32>
    %c32_i32_73 = arith.constant 32 : i32
    %157 = tpu.dynamic_rotate %154 by %c32_i32_73 dim 1 : vector<8x128xf32>, i32 -> vector<8x128xf32>
    %158 = arith.mulf %155, %125 : vector<8x128xf32>
    %159 = arith.mulf %154, %156 : vector<8x128xf32>
    %160 = arith.addf %158, %159 : vector<8x128xf32>
    %161 = math.tanh %160 : vector<8x128xf32>
    %162 = arith.mulf %157, %161 : vector<8x128xf32>
    %163 = vector.extract_strided_slice %17 {offsets = [32, 0], sizes = [8, 128], strides = [1, 1]} : vector<64x128xf32> to vector<8x128xf32>
    %c0_74 = arith.constant 0 : index
    %c0_75 = arith.constant 0 : index
    %164 = vector.load %arg2[%c0_74, %c0_75] : memref<128x128xf32, #tpu.memory_space<vmem>>, vector<128x128xf32>
    %cst_76 = arith.constant dense<0.000000e+00> : vector<8x128xf32>
    %165 = tpu.matmul %143, %164, %cst_76 {dimension_numbers = #tpu.dot_dimension_numbers<[1], [0], [0], [1], [0, 0, 1, 1], [], []>} : vector<8x128xf32>, vector<128x128xf32>, vector<8x128xf32> -> vector<8x128xf32>
    %166 = arith.addf %163, %165 : vector<8x128xf32>
    %167 = arith.mulf %166, %8 : vector<8x128xf32>
    %168 = math.tanh %167 : vector<8x128xf32>
    %169 = arith.mulf %168, %8 : vector<8x128xf32>
    %170 = arith.addf %169, %11 : vector<8x128xf32>
    %c96_i32_77 = arith.constant 96 : i32
    %171 = tpu.dynamic_rotate %170 by %c96_i32_77 dim 1 : vector<8x128xf32>, i32 -> vector<8x128xf32>
    %c64_i32_78 = arith.constant 64 : i32
    %172 = tpu.dynamic_rotate %170 by %c64_i32_78 dim 1 : vector<8x128xf32>, i32 -> vector<8x128xf32>
    %c32_i32_79 = arith.constant 32 : i32
    %173 = tpu.dynamic_rotate %170 by %c32_i32_79 dim 1 : vector<8x128xf32>, i32 -> vector<8x128xf32>
    %174 = arith.mulf %171, %141 : vector<8x128xf32>
    %175 = arith.mulf %170, %172 : vector<8x128xf32>
    %176 = arith.addf %174, %175 : vector<8x128xf32>
    %177 = math.tanh %176 : vector<8x128xf32>
    %178 = arith.mulf %173, %177 : vector<8x128xf32>
    %c0_80 = arith.constant 0 : index
    %c0_81 = arith.constant 0 : index
    %179 = vector.load %arg4[%c0_80, %c0_81] : memref<128x128xf32, #tpu.memory_space<vmem>>, vector<128x128xf32>
    %cst_82 = arith.constant dense<0.000000e+00> : vector<8x128xf32>
    %180 = tpu.matmul %178, %179, %cst_82 {dimension_numbers = #tpu.dot_dimension_numbers<[1], [0], [0], [1], [0, 0, 1, 1], [], []>} : vector<8x128xf32>, vector<128x128xf32>, vector<8x128xf32> -> vector<8x128xf32>
    %c0_83 = arith.constant 0 : index
    %c0_84 = arith.constant 0 : index
    %181 = vector.load %arg5[%c0_83, %c0_84] : memref<128x128xf32, #tpu.memory_space<vmem>>, vector<128x128xf32>
    %cst_85 = arith.constant dense<0.000000e+00> : vector<8x128xf32>
    %182 = tpu.matmul %162, %181, %cst_85 {dimension_numbers = #tpu.dot_dimension_numbers<[1], [0], [0], [1], [0, 0, 1, 1], [], []>} : vector<8x128xf32>, vector<128x128xf32>, vector<8x128xf32> -> vector<8x128xf32>
    %183 = arith.addf %180, %182 : vector<8x128xf32>
    %184 = vector.broadcast %18 : vector<1x128xf32> to vector<8x128xf32>
    %185 = arith.addf %183, %184 : vector<8x128xf32>
    %186 = arith.mulf %185, %8 : vector<8x128xf32>
    %187 = math.tanh %186 : vector<8x128xf32>
    %188 = arith.mulf %187, %8 : vector<8x128xf32>
    %189 = arith.addf %188, %11 : vector<8x128xf32>
    %c96_i32_86 = arith.constant 96 : i32
    %190 = tpu.dynamic_rotate %189 by %c96_i32_86 dim 1 : vector<8x128xf32>, i32 -> vector<8x128xf32>
    %c64_i32_87 = arith.constant 64 : i32
    %191 = tpu.dynamic_rotate %189 by %c64_i32_87 dim 1 : vector<8x128xf32>, i32 -> vector<8x128xf32>
    %c32_i32_88 = arith.constant 32 : i32
    %192 = tpu.dynamic_rotate %189 by %c32_i32_88 dim 1 : vector<8x128xf32>, i32 -> vector<8x128xf32>
    %193 = arith.mulf %190, %160 : vector<8x128xf32>
    %194 = arith.mulf %189, %191 : vector<8x128xf32>
    %195 = arith.addf %193, %194 : vector<8x128xf32>
    %196 = math.tanh %195 : vector<8x128xf32>
    %197 = arith.mulf %192, %196 : vector<8x128xf32>
    %198 = vector.extract_strided_slice %17 {offsets = [40, 0], sizes = [8, 128], strides = [1, 1]} : vector<64x128xf32> to vector<8x128xf32>
    %c0_89 = arith.constant 0 : index
    %c0_90 = arith.constant 0 : index
    %199 = vector.load %arg2[%c0_89, %c0_90] : memref<128x128xf32, #tpu.memory_space<vmem>>, vector<128x128xf32>
    %cst_91 = arith.constant dense<0.000000e+00> : vector<8x128xf32>
    %200 = tpu.matmul %178, %199, %cst_91 {dimension_numbers = #tpu.dot_dimension_numbers<[1], [0], [0], [1], [0, 0, 1, 1], [], []>} : vector<8x128xf32>, vector<128x128xf32>, vector<8x128xf32> -> vector<8x128xf32>
    %201 = arith.addf %198, %200 : vector<8x128xf32>
    %202 = arith.mulf %201, %8 : vector<8x128xf32>
    %203 = math.tanh %202 : vector<8x128xf32>
    %204 = arith.mulf %203, %8 : vector<8x128xf32>
    %205 = arith.addf %204, %11 : vector<8x128xf32>
    %c96_i32_92 = arith.constant 96 : i32
    %206 = tpu.dynamic_rotate %205 by %c96_i32_92 dim 1 : vector<8x128xf32>, i32 -> vector<8x128xf32>
    %c64_i32_93 = arith.constant 64 : i32
    %207 = tpu.dynamic_rotate %205 by %c64_i32_93 dim 1 : vector<8x128xf32>, i32 -> vector<8x128xf32>
    %c32_i32_94 = arith.constant 32 : i32
    %208 = tpu.dynamic_rotate %205 by %c32_i32_94 dim 1 : vector<8x128xf32>, i32 -> vector<8x128xf32>
    %209 = arith.mulf %206, %176 : vector<8x128xf32>
    %210 = arith.mulf %205, %207 : vector<8x128xf32>
    %211 = arith.addf %209, %210 : vector<8x128xf32>
    %212 = math.tanh %211 : vector<8x128xf32>
    %213 = arith.mulf %208, %212 : vector<8x128xf32>
    %c0_95 = arith.constant 0 : index
    %c0_96 = arith.constant 0 : index
    %214 = vector.load %arg4[%c0_95, %c0_96] : memref<128x128xf32, #tpu.memory_space<vmem>>, vector<128x128xf32>
    %cst_97 = arith.constant dense<0.000000e+00> : vector<8x128xf32>
    %215 = tpu.matmul %213, %214, %cst_97 {dimension_numbers = #tpu.dot_dimension_numbers<[1], [0], [0], [1], [0, 0, 1, 1], [], []>} : vector<8x128xf32>, vector<128x128xf32>, vector<8x128xf32> -> vector<8x128xf32>
    %c0_98 = arith.constant 0 : index
    %c0_99 = arith.constant 0 : index
    %216 = vector.load %arg5[%c0_98, %c0_99] : memref<128x128xf32, #tpu.memory_space<vmem>>, vector<128x128xf32>
    %cst_100 = arith.constant dense<0.000000e+00> : vector<8x128xf32>
    %217 = tpu.matmul %197, %216, %cst_100 {dimension_numbers = #tpu.dot_dimension_numbers<[1], [0], [0], [1], [0, 0, 1, 1], [], []>} : vector<8x128xf32>, vector<128x128xf32>, vector<8x128xf32> -> vector<8x128xf32>
    %218 = arith.addf %215, %217 : vector<8x128xf32>
    %219 = vector.broadcast %18 : vector<1x128xf32> to vector<8x128xf32>
    %220 = arith.addf %218, %219 : vector<8x128xf32>
    %221 = arith.mulf %220, %8 : vector<8x128xf32>
    %222 = math.tanh %221 : vector<8x128xf32>
    %223 = arith.mulf %222, %8 : vector<8x128xf32>
    %224 = arith.addf %223, %11 : vector<8x128xf32>
    %c96_i32_101 = arith.constant 96 : i32
    %225 = tpu.dynamic_rotate %224 by %c96_i32_101 dim 1 : vector<8x128xf32>, i32 -> vector<8x128xf32>
    %c64_i32_102 = arith.constant 64 : i32
    %226 = tpu.dynamic_rotate %224 by %c64_i32_102 dim 1 : vector<8x128xf32>, i32 -> vector<8x128xf32>
    %c32_i32_103 = arith.constant 32 : i32
    %227 = tpu.dynamic_rotate %224 by %c32_i32_103 dim 1 : vector<8x128xf32>, i32 -> vector<8x128xf32>
    %228 = arith.mulf %225, %195 : vector<8x128xf32>
    %229 = arith.mulf %224, %226 : vector<8x128xf32>
    %230 = arith.addf %228, %229 : vector<8x128xf32>
    %231 = math.tanh %230 : vector<8x128xf32>
    %232 = arith.mulf %227, %231 : vector<8x128xf32>
    %233 = vector.extract_strided_slice %17 {offsets = [48, 0], sizes = [8, 128], strides = [1, 1]} : vector<64x128xf32> to vector<8x128xf32>
    %c0_104 = arith.constant 0 : index
    %c0_105 = arith.constant 0 : index
    %234 = vector.load %arg2[%c0_104, %c0_105] : memref<128x128xf32, #tpu.memory_space<vmem>>, vector<128x128xf32>
    %cst_106 = arith.constant dense<0.000000e+00> : vector<8x128xf32>
    %235 = tpu.matmul %213, %234, %cst_106 {dimension_numbers = #tpu.dot_dimension_numbers<[1], [0], [0], [1], [0, 0, 1, 1], [], []>} : vector<8x128xf32>, vector<128x128xf32>, vector<8x128xf32> -> vector<8x128xf32>
    %236 = arith.addf %233, %235 : vector<8x128xf32>
    %237 = arith.mulf %236, %8 : vector<8x128xf32>
    %238 = math.tanh %237 : vector<8x128xf32>
    %239 = arith.mulf %238, %8 : vector<8x128xf32>
    %240 = arith.addf %239, %11 : vector<8x128xf32>
    %c96_i32_107 = arith.constant 96 : i32
    %241 = tpu.dynamic_rotate %240 by %c96_i32_107 dim 1 : vector<8x128xf32>, i32 -> vector<8x128xf32>
    %c64_i32_108 = arith.constant 64 : i32
    %242 = tpu.dynamic_rotate %240 by %c64_i32_108 dim 1 : vector<8x128xf32>, i32 -> vector<8x128xf32>
    %c32_i32_109 = arith.constant 32 : i32
    %243 = tpu.dynamic_rotate %240 by %c32_i32_109 dim 1 : vector<8x128xf32>, i32 -> vector<8x128xf32>
    %244 = arith.mulf %241, %211 : vector<8x128xf32>
    %245 = arith.mulf %240, %242 : vector<8x128xf32>
    %246 = arith.addf %244, %245 : vector<8x128xf32>
    %247 = math.tanh %246 : vector<8x128xf32>
    %248 = arith.mulf %243, %247 : vector<8x128xf32>
    %c0_110 = arith.constant 0 : index
    %c0_111 = arith.constant 0 : index
    %249 = vector.load %arg4[%c0_110, %c0_111] : memref<128x128xf32, #tpu.memory_space<vmem>>, vector<128x128xf32>
    %cst_112 = arith.constant dense<0.000000e+00> : vector<8x128xf32>
    %250 = tpu.matmul %248, %249, %cst_112 {dimension_numbers = #tpu.dot_dimension_numbers<[1], [0], [0], [1], [0, 0, 1, 1], [], []>} : vector<8x128xf32>, vector<128x128xf32>, vector<8x128xf32> -> vector<8x128xf32>
    %c0_113 = arith.constant 0 : index
    %c0_114 = arith.constant 0 : index
    %251 = vector.load %arg5[%c0_113, %c0_114] : memref<128x128xf32, #tpu.memory_space<vmem>>, vector<128x128xf32>
    %cst_115 = arith.constant dense<0.000000e+00> : vector<8x128xf32>
    %252 = tpu.matmul %232, %251, %cst_115 {dimension_numbers = #tpu.dot_dimension_numbers<[1], [0], [0], [1], [0, 0, 1, 1], [], []>} : vector<8x128xf32>, vector<128x128xf32>, vector<8x128xf32> -> vector<8x128xf32>
    %253 = arith.addf %250, %252 : vector<8x128xf32>
    %254 = vector.broadcast %18 : vector<1x128xf32> to vector<8x128xf32>
    %255 = arith.addf %253, %254 : vector<8x128xf32>
    %256 = arith.mulf %255, %8 : vector<8x128xf32>
    %257 = math.tanh %256 : vector<8x128xf32>
    %258 = arith.mulf %257, %8 : vector<8x128xf32>
    %259 = arith.addf %258, %11 : vector<8x128xf32>
    %c96_i32_116 = arith.constant 96 : i32
    %260 = tpu.dynamic_rotate %259 by %c96_i32_116 dim 1 : vector<8x128xf32>, i32 -> vector<8x128xf32>
    %c64_i32_117 = arith.constant 64 : i32
    %261 = tpu.dynamic_rotate %259 by %c64_i32_117 dim 1 : vector<8x128xf32>, i32 -> vector<8x128xf32>
    %c32_i32_118 = arith.constant 32 : i32
    %262 = tpu.dynamic_rotate %259 by %c32_i32_118 dim 1 : vector<8x128xf32>, i32 -> vector<8x128xf32>
    %263 = arith.mulf %260, %230 : vector<8x128xf32>
    %264 = arith.mulf %259, %261 : vector<8x128xf32>
    %265 = arith.addf %263, %264 : vector<8x128xf32>
    %266 = math.tanh %265 : vector<8x128xf32>
    %267 = arith.mulf %262, %266 : vector<8x128xf32>
    %268 = vector.extract_strided_slice %17 {offsets = [56, 0], sizes = [8, 128], strides = [1, 1]} : vector<64x128xf32> to vector<8x128xf32>
    %c0_119 = arith.constant 0 : index
    %c0_120 = arith.constant 0 : index
    %269 = vector.load %arg2[%c0_119, %c0_120] : memref<128x128xf32, #tpu.memory_space<vmem>>, vector<128x128xf32>
    %cst_121 = arith.constant dense<0.000000e+00> : vector<8x128xf32>
    %270 = tpu.matmul %248, %269, %cst_121 {dimension_numbers = #tpu.dot_dimension_numbers<[1], [0], [0], [1], [0, 0, 1, 1], [], []>} : vector<8x128xf32>, vector<128x128xf32>, vector<8x128xf32> -> vector<8x128xf32>
    %271 = arith.addf %268, %270 : vector<8x128xf32>
    %272 = arith.mulf %271, %8 : vector<8x128xf32>
    %273 = math.tanh %272 : vector<8x128xf32>
    %274 = arith.mulf %273, %8 : vector<8x128xf32>
    %275 = arith.addf %274, %11 : vector<8x128xf32>
    %c96_i32_122 = arith.constant 96 : i32
    %276 = tpu.dynamic_rotate %275 by %c96_i32_122 dim 1 : vector<8x128xf32>, i32 -> vector<8x128xf32>
    %c64_i32_123 = arith.constant 64 : i32
    %277 = tpu.dynamic_rotate %275 by %c64_i32_123 dim 1 : vector<8x128xf32>, i32 -> vector<8x128xf32>
    %c32_i32_124 = arith.constant 32 : i32
    %278 = tpu.dynamic_rotate %275 by %c32_i32_124 dim 1 : vector<8x128xf32>, i32 -> vector<8x128xf32>
    %279 = arith.mulf %276, %246 : vector<8x128xf32>
    %280 = arith.mulf %275, %277 : vector<8x128xf32>
    %281 = arith.addf %279, %280 : vector<8x128xf32>
    %282 = math.tanh %281 : vector<8x128xf32>
    %283 = arith.mulf %278, %282 : vector<8x128xf32>
    %c0_125 = arith.constant 0 : index
    %c0_126 = arith.constant 0 : index
    %284 = vector.load %arg4[%c0_125, %c0_126] : memref<128x128xf32, #tpu.memory_space<vmem>>, vector<128x128xf32>
    %cst_127 = arith.constant dense<0.000000e+00> : vector<8x128xf32>
    %285 = tpu.matmul %283, %284, %cst_127 {dimension_numbers = #tpu.dot_dimension_numbers<[1], [0], [0], [1], [0, 0, 1, 1], [], []>} : vector<8x128xf32>, vector<128x128xf32>, vector<8x128xf32> -> vector<8x128xf32>
    %c0_128 = arith.constant 0 : index
    %c0_129 = arith.constant 0 : index
    %286 = vector.load %arg5[%c0_128, %c0_129] : memref<128x128xf32, #tpu.memory_space<vmem>>, vector<128x128xf32>
    %cst_130 = arith.constant dense<0.000000e+00> : vector<8x128xf32>
    %287 = tpu.matmul %267, %286, %cst_130 {dimension_numbers = #tpu.dot_dimension_numbers<[1], [0], [0], [1], [0, 0, 1, 1], [], []>} : vector<8x128xf32>, vector<128x128xf32>, vector<8x128xf32> -> vector<8x128xf32>
    %288 = arith.addf %285, %287 : vector<8x128xf32>
    %289 = vector.broadcast %18 : vector<1x128xf32> to vector<8x128xf32>
    %290 = arith.addf %288, %289 : vector<8x128xf32>
    %291 = arith.mulf %290, %8 : vector<8x128xf32>
    %292 = math.tanh %291 : vector<8x128xf32>
    %293 = arith.mulf %292, %8 : vector<8x128xf32>
    %294 = arith.addf %293, %11 : vector<8x128xf32>
    %c96_i32_131 = arith.constant 96 : i32
    %295 = tpu.dynamic_rotate %294 by %c96_i32_131 dim 1 : vector<8x128xf32>, i32 -> vector<8x128xf32>
    %c64_i32_132 = arith.constant 64 : i32
    %296 = tpu.dynamic_rotate %294 by %c64_i32_132 dim 1 : vector<8x128xf32>, i32 -> vector<8x128xf32>
    %c32_i32_133 = arith.constant 32 : i32
    %297 = tpu.dynamic_rotate %294 by %c32_i32_133 dim 1 : vector<8x128xf32>, i32 -> vector<8x128xf32>
    %298 = arith.mulf %295, %265 : vector<8x128xf32>
    %299 = arith.mulf %294, %296 : vector<8x128xf32>
    %300 = arith.addf %298, %299 : vector<8x128xf32>
    %301 = math.tanh %300 : vector<8x128xf32>
    %302 = arith.mulf %297, %301 : vector<8x128xf32>
    %c0_134 = arith.constant 0 : index
    %c0_135 = arith.constant 0 : index
    %303 = vector.load %arg7[%c0_134, %c0_135] : memref<128x128xf32, #tpu.memory_space<vmem>>, vector<128x128xf32>
    %cst_136 = arith.constant dense<0.000000e+00> : vector<8x128xf32>
    %304 = tpu.matmul %302, %303, %cst_136 {dimension_numbers = #tpu.dot_dimension_numbers<[1], [0], [0], [1], [0, 0, 1, 1], [], []>} : vector<8x128xf32>, vector<128x128xf32>, vector<8x128xf32> -> vector<8x128xf32>
    %c0_137 = arith.constant 0 : index
    %c0_138 = arith.constant 0 : index
    %305 = vector.load %arg8[%c0_137, %c0_138] : memref<1x128xf32, #tpu.memory_space<vmem>>, vector<1x128xf32>
    %306 = vector.broadcast %305 : vector<1x128xf32> to vector<8x128xf32>
    %307 = arith.addf %304, %306 : vector<8x128xf32>
    %c0_139 = arith.constant 0 : index
    %c0_140 = arith.constant 0 : index
    %308 = vector.load %arg9[%c0_139, %c0_140] : memref<8x128xf32, #tpu.memory_space<vmem>>, vector<8x128xf32>
    tpu.vector_store %arg9[%c0_139, %c0_140], %307 {strides = array<i32>} : memref<8x128xf32, #tpu.memory_space<vmem>>, vector<8x128xf32>,
    return
  }
}

</mosaic_0001>

<llo_original>
// kernel: forward.1
$region0: #{forward.1}
  #allocation0 [shape = 'u32[]', space=smem, size = 0x4, offset = 0x4, fixed_abs, tag = 'smem constant byte address 0x4 - core index']
  #allocation1 [shape = 'u32[144,128]{1,0:T(1,128)}', space=vmem, size = 0x12000, scoped, tag = 'internal scratch']
  %s0 = inlined_call_operand.vmem [shape: f32[64,128], index: 0, kind: input, shape index: {}]
  %s1 = inlined_call_operand.hbm [shape: f32[128,128], index: 1, kind: input, shape index: {}]
  %s2 = inlined_call_operand.hbm [shape: f32[128,128], index: 2, kind: input, shape index: {}]
  %s3 = inlined_call_operand.vmem [shape: f32[1,128], index: 3, kind: input, shape index: {}]
  %s4 = inlined_call_operand.hbm [shape: f32[128,128], index: 4, kind: input, shape index: {}]
  %s5 = inlined_call_operand.hbm [shape: f32[128,128], index: 5, kind: input, shape index: {}]
  %s6 = inlined_call_operand.vmem [shape: f32[1,128], index: 6, kind: input, shape index: {}]
  %s7 = inlined_call_operand.hbm [shape: f32[128,128], index: 7, kind: input, shape index: {}]
  %s8 = inlined_call_operand.vmem [shape: f32[1,128], index: 8, kind: input, shape index: {}]
  %s9 = inlined_call_operand.vmem [shape: f32[8,128], index: 9, kind: output, shape index: {}]
  %s10 = sld [smem:[#allocation0]]
  $region66: #{forward.1} parent=0
    _
  %s12 = ssub.s32 1, %s10
  %s13 = scalar_select 0, %s12, %s10
  $region1: #{forward.1} parent=0
    #allocation2 [shape = 'u8[65536]{0}', space=vmem, size = 0x10000, scoped, tag = 'input window, operand 1, single buffered']
    #allocation3 [shape = 's32[1]{0}', space=sflag, size = 0x4, scoped, tag = 'scoped memory for forward.1']
    #allocation4 [shape = 'u8[65536]{0}', space=vmem, size = 0x10000, scoped, tag = 'input window, operand 2, single buffered']
    #allocation5 [shape = 's32[1]{0}', space=sflag, size = 0x4, scoped, tag = 'scoped memory for forward.1']
    #allocation6 [shape = 'u8[65536]{0}', space=vmem, size = 0x10000, scoped, tag = 'input window, operand 4, single buffered']
    #allocation7 [shape = 'u8[65536]{0}', space=vmem, size = 0x10000, scoped, tag = 'input window, operand 5, single buffered']
    #allocation8 [shape = 's32[1]{0}', space=sflag, size = 0x4, scoped, tag = 'scoped memory for forward.1']
    #allocation9 [shape = 'u8[65536]{0}', space=vmem, size = 0x10000, scoped, tag = 'input window, operand 7, single buffered']
    %14 = vsyncpa [#allocation3], 0
    %15 = vsyncpa [#allocation5], 0
    %16 = vsyncpa [#allocation8], 0
    // Predicated region
    $region2: #{forward.1} parent=1 // pred_check
      _
    $region3: #{forward.1} parent=1 // pred_check_branch
      %18 = sbr.rel (0) target = $region5
    $region4: #{forward.1} parent=1 // pred_region
      _
    $region5: #{forward.1} parent=1 // pred_fallthru
      _
    // Predicated region
    $region6: #{forward.1} parent=1 // pred_check
      _
    $region7: #{forward.1} parent=1 // pred_check_branch
      %20 = sbr.rel (0) target = $region9
    $region8: #{forward.1} parent=1 // pred_region
      %s22 = ssub.s32 2048, 2048
      %23 = vsyncadd [#allocation3], %s22
      %s24 = sshll.u32 [#allocation2], 4
      %s25 = int_to_ptr.vmem [resolvable:$true] %s24
      %30 = dma.hbm_to_vmem [thread:$0]  %s1, 2048, %s25, [#allocation3], 128, 128, 8
    $region9: #{forward.1} parent=1 // pred_fallthru
      _
    // Predicated region
    $region10: #{forward.1} parent=1 // pred_check
      _
    $region11: #{forward.1} parent=1 // pred_check_branch
      %32 = sbr.rel (0) target = $region13
    $region12: #{forward.1} parent=1 // pred_region
      %s34 = ssub.s32 2048, 2048
      %35 = vsyncadd [#allocation5], %s34
      %s36 = sshll.u32 [#allocation4], 4
      %s37 = int_to_ptr.vmem [resolvable:$true] %s36
      %42 = dma.hbm_to_vmem [thread:$0]  %s2, 2048, %s37, [#allocation5], 128, 128, 8
    $region13: #{forward.1} parent=1 // pred_fallthru
      _
    // Predicated region
    $region14: #{forward.1} parent=1 // pred_check
      _
    $region15: #{forward.1} parent=1 // pred_check_branch
      %44 = sbr.rel (0) target = $region17
    $region16: #{forward.1} parent=1 // pred_region
      _
    $region17: #{forward.1} parent=1 // pred_fallthru
      _
    // Predicated region
    $region18: #{forward.1} parent=1 // pred_check
      _
    $region19: #{forward.1} parent=1 // pred_check_branch
      %46 = sbr.rel (0) target = $region21
    $region20: #{forward.1} parent=1 // pred_region
      %s48 = ssub.s32 2048, 2048
      %49 = vsyncadd [#allocation5], %s48
      %s50 = sshll.u32 [#allocation6], 4
      %s51 = int_to_ptr.vmem [resolvable:$true] %s50
      %56 = dma.hbm_to_vmem [thread:$0]  %s4, 2048, %s51, [#allocation5], 128, 128, 8
    $region21: #{forward.1} parent=1 // pred_fallthru
      _
    // Predicated region
    $region22: #{forward.1} parent=1 // pred_check
      _
    $region23: #{forward.1} parent=1 // pred_check_branch
      %58 = sbr.rel (0) target = $region25
    $region24: #{forward.1} parent=1 // pred_region
      %s60 = ssub.s32 2048, 2048
      %61 = vsyncadd [#allocation8], %s60
      %s62 = sshll.u32 [#allocation7], 4
      %s63 = int_to_ptr.vmem [resolvable:$true] %s62
      %68 = dma.hbm_to_vmem [thread:$0]  %s5, 2048, %s63, [#allocation8], 128, 128, 8
    $region25: #{forward.1} parent=1 // pred_fallthru
      _
    // Predicated region
    $region26: #{forward.1} parent=1 // pred_check
      _
    $region27: #{forward.1} parent=1 // pred_check_branch
      %70 = sbr.rel (0) target = $region29
    $region28: #{forward.1} parent=1 // pred_region
      _
    $region29: #{forward.1} parent=1 // pred_fallthru
      _
    // Predicated region
    $region30: #{forward.1} parent=1 // pred_check
      _
    $region31: #{forward.1} parent=1 // pred_check_branch
      %72 = sbr.rel (0) target = $region33
    $region32: #{forward.1} parent=1 // pred_region
      %s74 = ssub.s32 2048, 2048
      %75 = vsyncadd [#allocation8], %s74
      %s76 = sshll.u32 [#allocation9], 4
      %s77 = int_to_ptr.vmem [resolvable:$true] %s76
      %82 = dma.hbm_to_vmem [thread:$0]  %s7, 2048, %s77, [#allocation8], 128, 128, 8
    $region33: #{forward.1} parent=1 // pred_fallthru
      _
    // Predicated region
    $region34: #{forward.1} parent=1 // pred_check
      _
    $region35: #{forward.1} parent=1 // pred_check_branch
      %84 = sbr.rel (0) target = $region37
    $region36: #{forward.1} parent=1 // pred_region
      _
    $region37: #{forward.1} parent=1 // pred_fallthru
      _
    // Predicated region
    $region38: #{forward.1} parent=1 // pred_check
      _
    $region39: #{forward.1} parent=1 // pred_check_branch
      %86 = sbr.rel (0) target = $region41
    $region40: #{forward.1} parent=1 // pred_region
      %87 = dma.done [#allocation3], 2048
    $region41: #{forward.1} parent=1 // pred_fallthru
      _
    // Predicated region
    $region42: #{forward.1} parent=1 // pred_check
      _
    $region43: #{forward.1} parent=1 // pred_check_branch
      %89 = sbr.rel (0) target = $region45
    $region44: #{forward.1} parent=1 // pred_region
      %90 = dma.done [#allocation5], 2048
    $region45: #{forward.1} parent=1 // pred_fallthru
      _
    // Predicated region
    $region46: #{forward.1} parent=1 // pred_check
      _
    $region47: #{forward.1} parent=1 // pred_check_branch
      %92 = sbr.rel (0) target = $region49
    $region48: #{forward.1} parent=1 // pred_region
      %93 = dma.done [#allocation5], 2048
    $region49: #{forward.1} parent=1 // pred_fallthru
      _
    // Predicated region
    $region50: #{forward.1} parent=1 // pred_check
      _
    $region51: #{forward.1} parent=1 // pred_check_branch
      %95 = sbr.rel (0) target = $region53
    $region52: #{forward.1} parent=1 // pred_region
      %96 = dma.done [#allocation8], 2048
    $region53: #{forward.1} parent=1 // pred_fallthru
      _
    // Predicated region
    $region54: #{forward.1} parent=1 // pred_check
      _
    $region55: #{forward.1} parent=1 // pred_check_branch
      %98 = sbr.rel (0) target = $region57
    $region56: #{forward.1} parent=1 // pred_region
      %99 = dma.done [#allocation8], 2048
    $region57: #{forward.1} parent=1 // pred_fallthru
      _
    %v100 = vlaneseq
    %v101 = vand.u32 %v100, 127
    %vm102 = vcmp.ge.s32.totalorder %v101, 64
    %vm103 = vcmp.lt.s32.totalorder %v101, 96
    %vm104 = vmand %vm102, %vm103
    %v105 = vsel %vm104, 1.0, 0.5
    %v106 = vsel %vm104, 0.0, 0.5
    %v107 = vld [vmem:[%s0] sm:$0xff]
    %v108 = vld [vmem:[%s0 + $0x8] sm:$0xff]
    %v109 = vld [vmem:[%s0 + $0x10] sm:$0xff]
    %v110 = vld [vmem:[%s0 + $0x18] sm:$0xff]
    %v111 = vld [vmem:[%s0 + $0x20] sm:$0xff]
    %v112 = vld [vmem:[%s0 + $0x28] sm:$0xff]
    %v113 = vld [vmem:[%s0 + $0x30] sm:$0xff]
    %v114 = vld [vmem:[%s0 + $0x38] sm:$0xff]
    %v115 = vld [vmem:[#allocation2] sm:$0xff]
    %v116 = vld [vmem:[#allocation2 + $0x8] sm:$0xff]
    %v117 = vld [vmem:[#allocation2 + $0x10] sm:$0xff]
    %v118 = vld [vmem:[#allocation2 + $0x18] sm:$0xff]
    %v119 = vld [vmem:[#allocation2 + $0x20] sm:$0xff]
    %v120 = vld [vmem:[#allocation2 + $0x28] sm:$0xff]
    %v121 = vld [vmem:[#allocation2 + $0x30] sm:$0xff]
    %v122 = vld [vmem:[#allocation2 + $0x38] sm:$0xff]
    %v123 = vld [vmem:[#allocation2 + $0x40] sm:$0xff]
    %v124 = vld [vmem:[#allocation2 + $0x48] sm:$0xff]
    %v125 = vld [vmem:[#allocation2 + $0x50] sm:$0xff]
    %v126 = vld [vmem:[#allocation2 + $0x58] sm:$0xff]
    %v127 = vld [vmem:[#allocation2 + $0x60] sm:$0xff]
    %v128 = vld [vmem:[#allocation2 + $0x68] sm:$0xff]
    %v129 = vld [vmem:[#allocation2 + $0x70] sm:$0xff]
    %v130 = vld [vmem:[#allocation2 + $0x78] sm:$0xff]
    %v131 = vld [vmem:[%s3] sm:$0x1]
    %v133 = vlaneseq
    %v134 = vshrl.u32 %v133, 7
    %v135 = vsub.s32 0, %v134
    %v136 = vrot.slane %v131, %v135
    %138 = vmatprep.subr.mxu0 0.0
    %139 = vmatpush1.msra.mxu0 %v130
    %140 = vmatprep.subr.mxu0 0.0
    %141 = vmatpush1.msra.mxu0 %v129
    %142 = vmatprep.subr.mxu0 0.0
    %143 = vmatpush1.msra.mxu0 %v128
    %144 = vmatprep.subr.mxu0 0.0
    %145 = vmatpush1.msra.mxu0 %v127
    %146 = vmatprep.subr.mxu0 0.0
    %147 = vmatpush1.msra.mxu0 %v126
    %148 = vmatprep.subr.mxu0 0.0
    %149 = vmatpush1.msra.mxu0 %v125
    %150 = vmatprep.subr.mxu0 0.0
    %151 = vmatpush1.msra.mxu0 %v124
    %152 = vmatprep.subr.mxu0 0.0
    %153 = vmatpush1.msra.mxu0 %v123
    %154 = vmatprep.subr.mxu0 0.0
    %155 = vmatpush1.msra.mxu0 %v122
    %156 = vmatprep.subr.mxu0 0.0
    %157 = vmatpush1.msra.mxu0 %v121
    %158 = vmatprep.subr.mxu0 0.0
    %159 = vmatpush1.msra.mxu0 %v120
    %160 = vmatprep.subr.mxu0 0.0
    %161 = vmatpush1.msra.mxu0 %v119
    %162 = vmatprep.subr.mxu0 0.0
    %163 = vmatpush1.msra.mxu0 %v118
    %164 = vmatprep.subr.mxu0 0.0
    %165 = vmatpush1.msra.mxu0 %v117
    %166 = vmatprep.subr.mxu0 0.0
    %167 = vmatpush1.msra.mxu0 %v116
    %168 = vmatprep.subr.mxu0 0.0
    %169 = vmatpush1.msra.mxu0 %v115
    %170 = vmatprep.subr.mxu0 0.0
    %171 = vmatpush2.msra.mxu0 0.0
    %172 = vmatprep.subr.mxu0 0.0
    %173 = vmatpush2.msra.mxu0 0.0
    %174 = vmatprep.subr.mxu0 0.0
    %175 = vmatpush2.msra.mxu0 0.0
    %176 = vmatprep.subr.mxu0 0.0
    %177 = vmatpush2.msra.mxu0 0.0
    %178 = vmatprep.subr.mxu0 0.0
    %179 = vmatpush2.msra.mxu0 0.0
    %180 = vmatprep.subr.mxu0 0.0
    %181 = vmatpush2.msra.mxu0 0.0
    %182 = vmatprep.subr.mxu0 0.0
    %183 = vmatpush2.msra.mxu0 0.0
    %184 = vmatprep.subr.mxu0 0.0
    %185 = vmatpush2.msra.mxu0 0.0
    %186 = vmatprep.subr.mxu0 0.0
    %187 = vmatpush2.msra.mxu0 0.0
    %188 = vmatprep.subr.mxu0 0.0
    %189 = vmatpush2.msra.mxu0 0.0
    %190 = vmatprep.subr.mxu0 0.0
    %191 = vmatpush2.msra.mxu0 0.0
    %192 = vmatprep.subr.mxu0 0.0
    %193 = vmatpush2.msra.mxu0 0.0
    %194 = vmatprep.subr.mxu0 0.0
    %195 = vmatpush2.msra.mxu0 0.0
    %196 = vmatprep.subr.mxu0 0.0
    %197 = vmatpush2.msra.mxu0 0.0
    %198 = vmatprep.subr.mxu0 0.0
    %199 = vmatpush2.msra.mxu0 0.0
    %200 = vmatprep.subr.mxu0 0.0
    %201 = vmatpush2.msra.mxu0 0.0
    %202 = vmatprep.mubr.f32.mxu0 0.0
    %203 = vmatmul.mubr.f32.gmra.mxu0 %v107
    %v204 = vpop.f32.mrf.mxu0
    %v205 = vadd.f32 %v136, %v204
    %v206 = vpop.f32.mrf.mxu0
    %207 = vmatprep.mubr.f32.mxu0 0.0
    %208 = vmatmul.mubr.f32.gmra.mxu0 %v108
    %v209 = vpop.f32.mrf.mxu0
    %v210 = vadd.f32 %v136, %v209
    %v211 = vpop.f32.mrf.mxu0
    %212 = vmatprep.mubr.f32.mxu0 0.0
    %213 = vmatmul.mubr.f32.gmra.mxu0 %v109
    %v214 = vpop.f32.mrf.mxu0
    %v215 = vadd.f32 %v136, %v214
    %v216 = vpop.f32.mrf.mxu0
    %217 = vmatprep.mubr.f32.mxu0 0.0
    %218 = vmatmul.mubr.f32.gmra.mxu0 %v110
    %v219 = vpop.f32.mrf.mxu0
    %v220 = vadd.f32 %v136, %v219
    %v221 = vpop.f32.mrf.mxu0
    %222 = vmatprep.mubr.f32.mxu0 0.0
    %223 = vmatmul.mubr.f32.gmra.mxu0 %v111
    %v224 = vpop.f32.mrf.mxu0
    %v225 = vadd.f32 %v136, %v224
    %v226 = vpop.f32.mrf.mxu0
    %227 = vmatprep.mubr.f32.mxu0 0.0
    %228 = vmatmul.mubr.f32.gmra.mxu0 %v112
    %v229 = vpop.f32.mrf.mxu0
    %v230 = vadd.f32 %v136, %v229
    %v231 = vpop.f32.mrf.mxu0
    %232 = vmatprep.mubr.f32.mxu0 0.0
    %233 = vmatmul.mubr.f32.gmra.mxu0 %v113
    %v234 = vpop.f32.mrf.mxu0
    %v235 = vadd.f32 %v136, %v234
    %v236 = vpop.f32.mrf.mxu0
    %237 = vmatprep.mubr.f32.mxu0 0.0
    %238 = vmatmul.mubr.f32.gmra.mxu0 %v114
    %v239 = vpop.f32.mrf.mxu0
    %v240 = vadd.f32 %v136, %v239
    %v241 = vpop.f32.mrf.mxu0
    %242 = vdwg.mxu0
    %v243 = vld [vmem:[%s6] sm:$0x1]
    %v244 = vld [vmem:[#allocation4] sm:$0xff]
    %v245 = vld [vmem:[#allocation4 + $0x8] sm:$0xff]
    %v246 = vld [vmem:[#allocation4 + $0x10] sm:$0xff]
    %v247 = vld [vmem:[#allocation4 + $0x18] sm:$0xff]
    %v248 = vld [vmem:[#allocation4 + $0x20] sm:$0xff]
    %v249 = vld [vmem:[#allocation4 + $0x28] sm:$0xff]
    %v250 = vld [vmem:[#allocation4 + $0x30] sm:$0xff]
    %v251 = vld [vmem:[#allocation4 + $0x38] sm:$0xff]
    %v252 = vld [vmem:[#allocation4 + $0x40] sm:$0xff]
    %v253 = vld [vmem:[#allocation4 + $0x48] sm:$0xff]
    %v254 = vld [vmem:[#allocation4 + $0x50] sm:$0xff]
    %v255 = vld [vmem:[#allocation4 + $0x58] sm:$0xff]
    %v256 = vld [vmem:[#allocation4 + $0x60] sm:$0xff]
    %v257 = vld [vmem:[#allocation4 + $0x68] sm:$0xff]
    %v258 = vld [vmem:[#allocation4 + $0x70] sm:$0xff]
    %v259 = vld [vmem:[#allocation4 + $0x78] sm:$0xff]
    %260 = vmatprep.subr.mxu0 0.0
    %261 = vmatpush1.msra.mxu0 %v259
    %262 = vmatprep.subr.mxu0 0.0
    %263 = vmatpush1.msra.mxu0 %v258
    %264 = vmatprep.subr.mxu0 0.0
    %265 = vmatpush1.msra.mxu0 %v257
    %266 = vmatprep.subr.mxu0 0.0
    %267 = vmatpush1.msra.mxu0 %v256
    %268 = vmatprep.subr.mxu0 0.0
    %269 = vmatpush1.msra.mxu0 %v255
    %270 = vmatprep.subr.mxu0 0.0
    %271 = vmatpush1.msra.mxu0 %v254
    %272 = vmatprep.subr.mxu0 0.0
    %273 = vmatpush1.msra.mxu0 %v253
    %274 = vmatprep.subr.mxu0 0.0
    %275 = vmatpush1.msra.mxu0 %v252
    %276 = vmatprep.subr.mxu0 0.0
    %277 = vmatpush1.msra.mxu0 %v251
    %278 = vmatprep.subr.mxu0 0.0
    %279 = vmatpush1.msra.mxu0 %v250
    %280 = vmatprep.subr.mxu0 0.0
    %281 = vmatpush1.msra.mxu0 %v249
    %282 = vmatprep.subr.mxu0 0.0
    %283 = vmatpush1.msra.mxu0 %v248
    %284 = vmatprep.subr.mxu0 0.0
    %285 = vmatpush1.msra.mxu0 %v247
    %286 = vmatprep.subr.mxu0 0.0
    %287 = vmatpush1.msra.mxu0 %v246
    %288 = vmatprep.subr.mxu0 0.0
    %289 = vmatpush1.msra.mxu0 %v245
    %290 = vmatprep.subr.mxu0 0.0
    %291 = vmatpush1.msra.mxu0 %v244
    %292 = vmatprep.subr.mxu0 0.0
    %293 = vmatpush2.msra.mxu0 0.0
    %294 = vmatprep.subr.mxu0 0.0
    %295 = vmatpush2.msra.mxu0 0.0
    %296 = vmatprep.subr.mxu0 0.0
    %297 = vmatpush2.msra.mxu0 0.0
    %298 = vmatprep.subr.mxu0 0.0
    %299 = vmatpush2.msra.mxu0 0.0
    %300 = vmatprep.subr.mxu0 0.0
    %301 = vmatpush2.msra.mxu0 0.0
    %302 = vmatprep.subr.mxu0 0.0
    %303 = vmatpush2.msra.mxu0 0.0
    %304 = vmatprep.subr.mxu0 0.0
    %305 = vmatpush2.msra.mxu0 0.0
    %306 = vmatprep.subr.mxu0 0.0
    %307 = vmatpush2.msra.mxu0 0.0
    %308 = vmatprep.subr.mxu0 0.0
    %309 = vmatpush2.msra.mxu0 0.0
    %310 = vmatprep.subr.mxu0 0.0
    %311 = vmatpush2.msra.mxu0 0.0
    %312 = vmatprep.subr.mxu0 0.0
    %313 = vmatpush2.msra.mxu0 0.0
    %314 = vmatprep.subr.mxu0 0.0
    %315 = vmatpush2.msra.mxu0 0.0
    %316 = vmatprep.subr.mxu0 0.0
    %317 = vmatpush2.msra.mxu0 0.0
    %318 = vmatprep.subr.mxu0 0.0
    %319 = vmatpush2.msra.mxu0 0.0
    %320 = vmatprep.subr.mxu0 0.0
    %321 = vmatpush2.msra.mxu0 0.0
    %322 = vmatprep.subr.mxu0 0.0
    %323 = vmatpush2.msra.mxu0 0.0
    %324 = vmatprep.mubr.f32.mxu0 0.0
    %325 = vmatmul.mubr.f32.gmra.mxu0 0.0
    %v326 = vpop.f32.mrf.mxu0
    %v327 = vadd.f32 0.0, %v326
    %v328 = vpop.f32.mrf.mxu0
    %329 = vdwg.mxu0
    %v330 = vadd.f32 %v205, %v327
    %v331 = vmul.f32 %v330, %v105
    %v332 = vtanh.pop %v331
    %v333 = vmul.f32 %v332, %v105
    %v334 = vadd.f32 %v333, %v106
    %335 = vrot.lane.b32.xlu0 %v334, 96
    %v336 = vpop.permute.xlu0 %335
    %337 = vrot.lane.b32.xlu0 %v334, 64
    %v338 = vpop.permute.xlu0 %337
    %339 = vrot.lane.b32.xlu0 %v334, 32
    %v340 = vpop.permute.xlu0 %339
    %v341 = vmul.f32 %v336, 0.0
    %v342 = vmul.f32 %v334, %v338
    %v343 = vadd.f32 %v341, %v342
    %v344 = vtanh.pop %v343
    %v345 = vmul.f32 %v340, %v344
    %v346 = vld [vmem:[#allocation6] sm:$0xff]
    %v347 = vld [vmem:[#allocation6 + $0x8] sm:$0xff]
    %v348 = vld [vmem:[#allocation6 + $0x10] sm:$0xff]
    %v349 = vld [vmem:[#allocation6 + $0x18] sm:$0xff]
    %v350 = vld [vmem:[#allocation6 + $0x20] sm:$0xff]
    %v351 = vld [vmem:[#allocation6 + $0x28] sm:$0xff]
    %v352 = vld [vmem:[#allocation6 + $0x30] sm:$0xff]
    %v353 = vld [vmem:[#allocation6 + $0x38] sm:$0xff]
    %v354 = vld [vmem:[#allocation6 + $0x40] sm:$0xff]
    %v355 = vld [vmem:[#allocation6 + $0x48] sm:$0xff]
    %v356 = vld [vmem:[#allocation6 + $0x50] sm:$0xff]
    %v357 = vld [vmem:[#allocation6 + $0x58] sm:$0xff]
    %v358 = vld [vmem:[#allocation6 + $0x60] sm:$0xff]
    %v359 = vld [vmem:[#allocation6 + $0x68] sm:$0xff]
    %v360 = vld [vmem:[#allocation6 + $0x70] sm:$0xff]
    %v361 = vld [vmem:[#allocation6 + $0x78] sm:$0xff]
    %v362 = vld [vmem:[#allocation7] sm:$0xff]
    %v363 = vld [vmem:[#allocation7 + $0x8] sm:$0xff]
    %v364 = vld [vmem:[#allocation7 + $0x10] sm:$0xff]
    %v365 = vld [vmem:[#allocation7 + $0x18] sm:$0xff]
    %v366 = vld [vmem:[#allocation7 + $0x20] sm:$0xff]
    %v367 = vld [vmem:[#allocation7 + $0x28] sm:$0xff]
    %v368 = vld [vmem:[#allocation7 + $0x30] sm:$0xff]
    %v369 = vld [vmem:[#allocation7 + $0x38] sm:$0xff]
    %v370 = vld [vmem:[#allocation7 + $0x40] sm:$0xff]
    %v371 = vld [vmem:[#allocation7 + $0x48] sm:$0xff]
    %v372 = vld [vmem:[#allocation7 + $0x50] sm:$0xff]
    %v373 = vld [vmem:[#allocation7 + $0x58] sm:$0xff]
    %v374 = vld [vmem:[#allocation7 + $0x60] sm:$0xff]
    %v375 = vld [vmem:[#allocation7 + $0x68] sm:$0xff]
    %v376 = vld [vmem:[#allocation7 + $0x70] sm:$0xff]
    %v377 = vld [vmem:[#allocation7 + $0x78] sm:$0xff]
    %378 = vmatprep.subr.mxu0 0.0
    %379 = vmatpush1.msra.mxu0 %v377
    %380 = vmatprep.subr.mxu0 0.0
    %381 = vmatpush1.msra.mxu0 %v376
    %382 = vmatprep.subr.mxu0 0.0
    %383 = vmatpush1.msra.mxu0 %v375
    %384 = vmatprep.subr.mxu0 0.0
    %385 = vmatpush1.msra.mxu0 %v374
    %386 = vmatprep.subr.mxu0 0.0
    %387 = vmatpush1.msra.mxu0 %v373
    %388 = vmatprep.subr.mxu0 0.0
    %389 = vmatpush1.msra.mxu0 %v372
    %390 = vmatprep.subr.mxu0 0.0
    %391 = vmatpush1.msra.mxu0 %v371
    %392 = vmatprep.subr.mxu0 0.0
    %393 = vmatpush1.msra.mxu0 %v370
    %394 = vmatprep.subr.mxu0 0.0
    %395 = vmatpush1.msra.mxu0 %v369
    %396 = vmatprep.subr.mxu0 0.0
    %397 = vmatpush1.msra.mxu0 %v368
    %398 = vmatprep.subr.mxu0 0.0
    %399 = vmatpush1.msra.mxu0 %v367
    %400 = vmatprep.subr.mxu0 0.0
    %401 = vmatpush1.msra.mxu0 %v366
    %402 = vmatprep.subr.mxu0 0.0
    %403 = vmatpush1.msra.mxu0 %v365
    %404 = vmatprep.subr.mxu0 0.0
    %405 = vmatpush1.msra.mxu0 %v364
    %406 = vmatprep.subr.mxu0 0.0
    %407 = vmatpush1.msra.mxu0 %v363
    %408 = vmatprep.subr.mxu0 0.0
    %409 = vmatpush1.msra.mxu0 %v362
    %410 = vmatprep.subr.mxu0 0.0
    %411 = vmatpush2.msra.mxu0 0.0
    %412 = vmatprep.subr.mxu0 0.0
    %413 = vmatpush2.msra.mxu0 0.0
    %414 = vmatprep.subr.mxu0 0.0
    %415 = vmatpush2.msra.mxu0 0.0
    %416 = vmatprep.subr.mxu0 0.0
    %417 = vmatpush2.msra.mxu0 0.0
    %418 = vmatprep.subr.mxu0 0.0
    %419 = vmatpush2.msra.mxu0 0.0
    %420 = vmatprep.subr.mxu0 0.0
    %421 = vmatpush2.msra.mxu0 0.0
    %422 = vmatprep.subr.mxu0 0.0
    %423 = vmatpush2.msra.mxu0 0.0
    %424 = vmatprep.subr.mxu0 0.0
    %425 = vmatpush2.msra.mxu0 0.0
    %426 = vmatprep.subr.mxu0 0.0
    %427 = vmatpush2.msra.mxu0 0.0
    %428 = vmatprep.subr.mxu0 0.0
    %429 = vmatpush2.msra.mxu0 0.0
    %430 = vmatprep.subr.mxu0 0.0
    %431 = vmatpush2.msra.mxu0 0.0
    %432 = vmatprep.subr.mxu0 0.0
    %433 = vmatpush2.msra.mxu0 0.0
    %434 = vmatprep.subr.mxu0 0.0
    %435 = vmatpush2.msra.mxu0 0.0
    %436 = vmatprep.subr.mxu0 0.0
    %437 = vmatpush2.msra.mxu0 0.0
    %438 = vmatprep.subr.mxu0 0.0
    %439 = vmatpush2.msra.mxu0 0.0
    %440 = vmatprep.subr.mxu0 0.0
    %441 = vmatpush2.msra.mxu0 0.0
    %442 = vmatprep.mubr.f32.mxu0 0.0
    %443 = vmatmul.mubr.f32.gmra.mxu0 0.0
    %v444 = vpop.f32.mrf.mxu0
    %v445 = vadd.f32 0.0, %v444
    %v446 = vpop.f32.mrf.mxu0
    %447 = vdwg.mxu0
    %448 = vmatprep.subr.mxu0 0.0
    %449 = vmatpush1.msra.mxu0 %v361
    %450 = vmatprep.subr.mxu0 0.0
    %451 = vmatpush1.msra.mxu0 %v360
    %452 = vmatprep.subr.mxu0 0.0
    %453 = vmatpush1.msra.mxu0 %v359
    %454 = vmatprep.subr.mxu0 0.0
    %455 = vmatpush1.msra.mxu0 %v358
    %456 = vmatprep.subr.mxu0 0.0
    %457 = vmatpush1.msra.mxu0 %v357
    %458 = vmatprep.subr.mxu0 0.0
    %459 = vmatpush1.msra.mxu0 %v356
    %460 = vmatprep.subr.mxu0 0.0
    %461 = vmatpush1.msra.mxu0 %v355
    %462 = vmatprep.subr.mxu0 0.0
    %463 = vmatpush1.msra.mxu0 %v354
    %464 = vmatprep.subr.mxu0 0.0
    %465 = vmatpush1.msra.mxu0 %v353
    %466 = vmatprep.subr.mxu0 0.0
    %467 = vmatpush1.msra.mxu0 %v352
    %468 = vmatprep.subr.mxu0 0.0
    %469 = vmatpush1.msra.mxu0 %v351
    %470 = vmatprep.subr.mxu0 0.0
    %471 = vmatpush1.msra.mxu0 %v350
    %472 = vmatprep.subr.mxu0 0.0
    %473 = vmatpush1.msra.mxu0 %v349
    %474 = vmatprep.subr.mxu0 0.0
    %475 = vmatpush1.msra.mxu0 %v348
    %476 = vmatprep.subr.mxu0 0.0
    %477 = vmatpush1.msra.mxu0 %v347
    %478 = vmatprep.subr.mxu0 0.0
    %479 = vmatpush1.msra.mxu0 %v346
    %480 = vmatprep.subr.mxu0 0.0
    %481 = vmatpush2.msra.mxu0 0.0
    %482 = vmatprep.subr.mxu0 0.0
    %483 = vmatpush2.msra.mxu0 0.0
    %484 = vmatprep.subr.mxu0 0.0
    %485 = vmatpush2.msra.mxu0 0.0
    %486 = vmatprep.subr.mxu0 0.0
    %487 = vmatpush2.msra.mxu0 0.0
    %488 = vmatprep.subr.mxu0 0.0
    %489 = vmatpush2.msra.mxu0 0.0
    %490 = vmatprep.subr.mxu0 0.0
    %491 = vmatpush2.msra.mxu0 0.0
    %492 = vmatprep.subr.mxu0 0.0
    %493 = vmatpush2.msra.mxu0 0.0
    %494 = vmatprep.subr.mxu0 0.0
    %495 = vmatpush2.msra.mxu0 0.0
    %496 = vmatprep.subr.mxu0 0.0
    %497 = vmatpush2.msra.mxu0 0.0
    %498 = vmatprep.subr.mxu0 0.0
    %499 = vmatpush2.msra.mxu0 0.0
    %500 = vmatprep.subr.mxu0 0.0
    %501 = vmatpush2.msra.mxu0 0.0
    %502 = vmatprep.subr.mxu0 0.0
    %503 = vmatpush2.msra.mxu0 0.0
    %504 = vmatprep.subr.mxu0 0.0
    %505 = vmatpush2.msra.mxu0 0.0
    %506 = vmatprep.subr.mxu0 0.0
    %507 = vmatpush2.msra.mxu0 0.0
    %508 = vmatprep.subr.mxu0 0.0
    %509 = vmatpush2.msra.mxu0 0.0
    %510 = vmatprep.subr.mxu0 0.0
    %511 = vmatpush2.msra.mxu0 0.0
    %512 = vmatprep.mubr.f32.mxu0 0.0
    %513 = vmatmul.mubr.f32.gmra.mxu0 %v345
    %v514 = vpop.f32.mrf.mxu0
    %v515 = vadd.f32 %v445, %v514
    %v516 = vpop.f32.mrf.mxu0
    %517 = vdwg.mxu0
    %v519 = vlaneseq
    %v520 = vshrl.u32 %v519, 7
    %v521 = vsub.s32 0, %v520
    %v522 = vrot.slane %v243, %v521
    %v524 = vadd.f32 %v515, %v522
    %v525 = vmul.f32 %v524, %v105
    %v526 = vtanh.pop %v525
    %v527 = vmul.f32 %v526, %v105
    %v528 = vadd.f32 %v527, %v106
    %529 = vrot.lane.b32.xlu0 %v528, 96
    %v530 = vpop.permute.xlu0 %529
    %531 = vrot.lane.b32.xlu0 %v528, 64
    %v532 = vpop.permute.xlu0 %531
    %533 = vrot.lane.b32.xlu0 %v528, 32
    %v534 = vpop.permute.xlu0 %533
    %v535 = vmul.f32 %v530, 0.0
    %v536 = vmul.f32 %v528, %v532
    %v537 = vadd.f32 %v535, %v536
    %v538 = vtanh.pop %v537
    %v539 = vmul.f32 %v534, %v538
    %540 = vmatprep.subr.mxu0 0.0
    %541 = vmatpush1.msra.mxu0 %v259
    %542 = vmatprep.subr.mxu0 0.0
    %543 = vmatpush1.msra.mxu0 %v258
    %544 = vmatprep.subr.mxu0 0.0
    %545 = vmatpush1.msra.mxu0 %v257
    %546 = vmatprep.subr.mxu0 0.0
    %547 = vmatpush1.msra.mxu0 %v256
    %548 = vmatprep.subr.mxu0 0.0
    %549 = vmatpush1.msra.mxu0 %v255
    %550 = vmatprep.subr.mxu0 0.0
    %551 = vmatpush1.msra.mxu0 %v254
    %552 = vmatprep.subr.mxu0 0.0
    %553 = vmatpush1.msra.mxu0 %v253
    %554 = vmatprep.subr.mxu0 0.0
    %555 = vmatpush1.msra.mxu0 %v252
    %556 = vmatprep.subr.mxu0 0.0
    %557 = vmatpush1.msra.mxu0 %v251
    %558 = vmatprep.subr.mxu0 0.0
    %559 = vmatpush1.msra.mxu0 %v250
    %560 = vmatprep.subr.mxu0 0.0
    %561 = vmatpush1.msra.mxu0 %v249
    %562 = vmatprep.subr.mxu0 0.0
    %563 = vmatpush1.msra.mxu0 %v248
    %564 = vmatprep.subr.mxu0 0.0
    %565 = vmatpush1.msra.mxu0 %v247
    %566 = vmatprep.subr.mxu0 0.0
    %567 = vmatpush1.msra.mxu0 %v246
    %568 = vmatprep.subr.mxu0 0.0
    %569 = vmatpush1.msra.mxu0 %v245
    %570 = vmatprep.subr.mxu0 0.0
    %571 = vmatpush1.msra.mxu0 %v244
    %572 = vmatprep.subr.mxu0 0.0
    %573 = vmatpush2.msra.mxu0 0.0
    %574 = vmatprep.subr.mxu0 0.0
    %575 = vmatpush2.msra.mxu0 0.0
    %576 = vmatprep.subr.mxu0 0.0
    %577 = vmatpush2.msra.mxu0 0.0
    %578 = vmatprep.subr.mxu0 0.0
    %579 = vmatpush2.msra.mxu0 0.0
    %580 = vmatprep.subr.mxu0 0.0
    %581 = vmatpush2.msra.mxu0 0.0
    %582 = vmatprep.subr.mxu0 0.0
    %583 = vmatpush2.msra.mxu0 0.0
    %584 = vmatprep.subr.mxu0 0.0
    %585 = vmatpush2.msra.mxu0 0.0
    %586 = vmatprep.subr.mxu0 0.0
    %587 = vmatpush2.msra.mxu0 0.0
    %588 = vmatprep.subr.mxu0 0.0
    %589 = vmatpush2.msra.mxu0 0.0
    %590 = vmatprep.subr.mxu0 0.0
    %591 = vmatpush2.msra.mxu0 0.0
    %592 = vmatprep.subr.mxu0 0.0
    %593 = vmatpush2.msra.mxu0 0.0
    %594 = vmatprep.subr.mxu0 0.0
    %595 = vmatpush2.msra.mxu0 0.0
    %596 = vmatprep.subr.mxu0 0.0
    %597 = vmatpush2.msra.mxu0 0.0
    %598 = vmatprep.subr.mxu0 0.0
    %599 = vmatpush2.msra.mxu0 0.0
    %600 = vmatprep.subr.mxu0 0.0
    %601 = vmatpush2.msra.mxu0 0.0
    %602 = vmatprep.subr.mxu0 0.0
    %603 = vmatpush2.msra.mxu0 0.0
    %604 = vmatprep.mubr.f32.mxu0 0.0
    %605 = vmatmul.mubr.f32.gmra.mxu0 %v345
    %v606 = vpop.f32.mrf.mxu0
    %v607 = vadd.f32 0.0, %v606
    %v608 = vpop.f32.mrf.mxu0
    %609 = vdwg.mxu0
    %v610 = vadd.f32 %v210, %v607
    %v611 = vmul.f32 %v610, %v105
    %v612 = vtanh.pop %v611
    %v613 = vmul.f32 %v612, %v105
    %v614 = vadd.f32 %v613, %v106
    %615 = vrot.lane.b32.xlu0 %v614, 96
    %v616 = vpop.permute.xlu0 %615
    %617 = vrot.lane.b32.xlu0 %v614, 64
    %v618 = vpop.permute.xlu0 %617
    %619 = vrot.lane.b32.xlu0 %v614, 32
    %v620 = vpop.permute.xlu0 %619
    %v621 = vmul.f32 %v616, %v343
    %v622 = vmul.f32 %v614, %v618
    %v623 = vadd.f32 %v621, %v622
    %v624 = vtanh.pop %v623
    %v625 = vmul.f32 %v620, %v624
    %626 = vmatprep.subr.mxu0 0.0
    %627 = vmatpush1.msra.mxu0 %v377
    %628 = vmatprep.subr.mxu0 0.0
    %629 = vmatpush1.msra.mxu0 %v376
    %630 = vmatprep.subr.mxu0 0.0
    %631 = vmatpush1.msra.mxu0 %v375
    %632 = vmatprep.subr.mxu0 0.0
    %633 = vmatpush1.msra.mxu0 %v374
    %634 = vmatprep.subr.mxu0 0.0
    %635 = vmatpush1.msra.mxu0 %v373
    %636 = vmatprep.subr.mxu0 0.0
    %637 = vmatpush1.msra.mxu0 %v372
    %638 = vmatprep.subr.mxu0 0.0
    %639 = vmatpush1.msra.mxu0 %v371
    %640 = vmatprep.subr.mxu0 0.0
    %641 = vmatpush1.msra.mxu0 %v370
    %642 = vmatprep.subr.mxu0 0.0
    %643 = vmatpush1.msra.mxu0 %v369
    %644 = vmatprep.subr.mxu0 0.0
    %645 = vmatpush1.msra.mxu0 %v368
    %646 = vmatprep.subr.mxu0 0.0
    %647 = vmatpush1.msra.mxu0 %v367
    %648 = vmatprep.subr.mxu0 0.0
    %649 = vmatpush1.msra.mxu0 %v366
    %650 = vmatprep.subr.mxu0 0.0
    %651 = vmatpush1.msra.mxu0 %v365
    %652 = vmatprep.subr.mxu0 0.0
    %653 = vmatpush1.msra.mxu0 %v364
    %654 = vmatprep.subr.mxu0 0.0
    %655 = vmatpush1.msra.mxu0 %v363
    %656 = vmatprep.subr.mxu0 0.0
    %657 = vmatpush1.msra.mxu0 %v362
    %658 = vmatprep.subr.mxu0 0.0
    %659 = vmatpush2.msra.mxu0 0.0
    %660 = vmatprep.subr.mxu0 0.0
    %661 = vmatpush2.msra.mxu0 0.0
    %662 = vmatprep.subr.mxu0 0.0
    %663 = vmatpush2.msra.mxu0 0.0
    %664 = vmatprep.subr.mxu0 0.0
    %665 = vmatpush2.msra.mxu0 0.0
    %666 = vmatprep.subr.mxu0 0.0
    %667 = vmatpush2.msra.mxu0 0.0
    %668 = vmatprep.subr.mxu0 0.0
    %669 = vmatpush2.msra.mxu0 0.0
    %670 = vmatprep.subr.mxu0 0.0
    %671 = vmatpush2.msra.mxu0 0.0
    %672 = vmatprep.subr.mxu0 0.0
    %673 = vmatpush2.msra.mxu0 0.0
    %674 = vmatprep.subr.mxu0 0.0
    %675 = vmatpush2.msra.mxu0 0.0
    %676 = vmatprep.subr.mxu0 0.0
    %677 = vmatpush2.msra.mxu0 0.0
    %678 = vmatprep.subr.mxu0 0.0
    %679 = vmatpush2.msra.mxu0 0.0
    %680 = vmatprep.subr.mxu0 0.0
    %681 = vmatpush2.msra.mxu0 0.0
    %682 = vmatprep.subr.mxu0 0.0
    %683 = vmatpush2.msra.mxu0 0.0
    %684 = vmatprep.subr.mxu0 0.0
    %685 = vmatpush2.msra.mxu0 0.0
    %686 = vmatprep.subr.mxu0 0.0
    %687 = vmatpush2.msra.mxu0 0.0
    %688 = vmatprep.subr.mxu0 0.0
    %689 = vmatpush2.msra.mxu0 0.0
    %690 = vmatprep.mubr.f32.mxu0 0.0
    %691 = vmatmul.mubr.f32.gmra.mxu0 %v539
    %v692 = vpop.f32.mrf.mxu0
    %v693 = vadd.f32 0.0, %v692
    %v694 = vpop.f32.mrf.mxu0
    %695 = vdwg.mxu0
    %696 = vmatprep.subr.mxu0 0.0
    %697 = vmatpush1.msra.mxu0 %v361
    %698 = vmatprep.subr.mxu0 0.0
    %699 = vmatpush1.msra.mxu0 %v360
    %700 = vmatprep.subr.mxu0 0.0
    %701 = vmatpush1.msra.mxu0 %v359
    %702 = vmatprep.subr.mxu0 0.0
    %703 = vmatpush1.msra.mxu0 %v358
    %704 = vmatprep.subr.mxu0 0.0
    %705 = vmatpush1.msra.mxu0 %v357
    %706 = vmatprep.subr.mxu0 0.0
    %707 = vmatpush1.msra.mxu0 %v356
    %708 = vmatprep.subr.mxu0 0.0
    %709 = vmatpush1.msra.mxu0 %v355
    %710 = vmatprep.subr.mxu0 0.0
    %711 = vmatpush1.msra.mxu0 %v354
    %712 = vmatprep.subr.mxu0 0.0
    %713 = vmatpush1.msra.mxu0 %v353
    %714 = vmatprep.subr.mxu0 0.0
    %715 = vmatpush1.msra.mxu0 %v352
    %716 = vmatprep.subr.mxu0 0.0
    %717 = vmatpush1.msra.mxu0 %v351
    %718 = vmatprep.subr.mxu0 0.0
    %719 = vmatpush1.msra.mxu0 %v350
    %720 = vmatprep.subr.mxu0 0.0
    %721 = vmatpush1.msra.mxu0 %v349
    %722 = vmatprep.subr.mxu0 0.0
    %723 = vmatpush1.msra.mxu0 %v348
    %724 = vmatprep.subr.mxu0 0.0
    %725 = vmatpush1.msra.mxu0 %v347
    %726 = vmatprep.subr.mxu0 0.0
    %727 = vmatpush1.msra.mxu0 %v346
    %728 = vmatprep.subr.mxu0 0.0
    %729 = vmatpush2.msra.mxu0 0.0
    %730 = vmatprep.subr.mxu0 0.0
    %731 = vmatpush2.msra.mxu0 0.0
    %732 = vmatprep.subr.mxu0 0.0
    %733 = vmatpush2.msra.mxu0 0.0
    %734 = vmatprep.subr.mxu0 0.0
    %735 = vmatpush2.msra.mxu0 0.0
    %736 = vmatprep.subr.mxu0 0.0
    %737 = vmatpush2.msra.mxu0 0.0
    %738 = vmatprep.subr.mxu0 0.0
    %739 = vmatpush2.msra.mxu0 0.0
    %740 = vmatprep.subr.mxu0 0.0
    %741 = vmatpush2.msra.mxu0 0.0
    %742 = vmatprep.subr.mxu0 0.0
    %743 = vmatpush2.msra.mxu0 0.0
    %744 = vmatprep.subr.mxu0 0.0
    %745 = vmatpush2.msra.mxu0 0.0
    %746 = vmatprep.subr.mxu0 0.0
    %747 = vmatpush2.msra.mxu0 0.0
    %748 = vmatprep.subr.mxu0 0.0
    %749 = vmatpush2.msra.mxu0 0.0
    %750 = vmatprep.subr.mxu0 0.0
    %751 = vmatpush2.msra.mxu0 0.0
    %752 = vmatprep.subr.mxu0 0.0
    %753 = vmatpush2.msra.mxu0 0.0
    %754 = vmatprep.subr.mxu0 0.0
    %755 = vmatpush2.msra.mxu0 0.0
    %756 = vmatprep.subr.mxu0 0.0
    %757 = vmatpush2.msra.mxu0 0.0
    %758 = vmatprep.subr.mxu0 0.0
    %759 = vmatpush2.msra.mxu0 0.0
    %760 = vmatprep.mubr.f32.mxu0 0.0
    %761 = vmatmul.mubr.f32.gmra.mxu0 %v625
    %v762 = vpop.f32.mrf.mxu0
    %v763 = vadd.f32 %v693, %v762
    %v764 = vpop.f32.mrf.mxu0
    %765 = vdwg.mxu0
    %v766 = vadd.f32 %v763, %v522
    %v767 = vmul.f32 %v766, %v105
    %v768 = vtanh.pop %v767
    %v769 = vmul.f32 %v768, %v105
    %v770 = vadd.f32 %v769, %v106
    %771 = vrot.lane.b32.xlu0 %v770, 96
    %v772 = vpop.permute.xlu0 %771
    %773 = vrot.lane.b32.xlu0 %v770, 64
    %v774 = vpop.permute.xlu0 %773
    %775 = vrot.lane.b32.xlu0 %v770, 32
    %v776 = vpop.permute.xlu0 %775
    %v777 = vmul.f32 %v772, %v537
    %v778 = vmul.f32 %v770, %v774
    %v779 = vadd.f32 %v777, %v778
    %v780 = vtanh.pop %v779
    %v781 = vmul.f32 %v776, %v780
    %782 = vmatprep.subr.mxu0 0.0
    %783 = vmatpush1.msra.mxu0 %v259
    %784 = vmatprep.subr.mxu0 0.0
    %785 = vmatpush1.msra.mxu0 %v258
    %786 = vmatprep.subr.mxu0 0.0
    %787 = vmatpush1.msra.mxu0 %v257
    %788 = vmatprep.subr.mxu0 0.0
    %789 = vmatpush1.msra.mxu0 %v256
    %790 = vmatprep.subr.mxu0 0.0
    %791 = vmatpush1.msra.mxu0 %v255
    %792 = vmatprep.subr.mxu0 0.0
    %793 = vmatpush1.msra.mxu0 %v254
    %794 = vmatprep.subr.mxu0 0.0
    %795 = vmatpush1.msra.mxu0 %v253
    %796 = vmatprep.subr.mxu0 0.0
    %797 = vmatpush1.msra.mxu0 %v252
    %798 = vmatprep.subr.mxu0 0.0
    %799 = vmatpush1.msra.mxu0 %v251
    %800 = vmatprep.subr.mxu0 0.0
    %801 = vmatpush1.msra.mxu0 %v250
    %802 = vmatprep.subr.mxu0 0.0
    %803 = vmatpush1.msra.mxu0 %v249
    %804 = vmatprep.subr.mxu0 0.0
    %805 = vmatpush1.msra.mxu0 %v248
    %806 = vmatprep.subr.mxu0 0.0
    %807 = vmatpush1.msra.mxu0 %v247
    %808 = vmatprep.subr.mxu0 0.0
    %809 = vmatpush1.msra.mxu0 %v246
    %810 = vmatprep.subr.mxu0 0.0
    %811 = vmatpush1.msra.mxu0 %v245
    %812 = vmatprep.subr.mxu0 0.0
    %813 = vmatpush1.msra.mxu0 %v244
    %814 = vmatprep.subr.mxu0 0.0
    %815 = vmatpush2.msra.mxu0 0.0
    %816 = vmatprep.subr.mxu0 0.0
    %817 = vmatpush2.msra.mxu0 0.0
    %818 = vmatprep.subr.mxu0 0.0
    %819 = vmatpush2.msra.mxu0 0.0
    %820 = vmatprep.subr.mxu0 0.0
    %821 = vmatpush2.msra.mxu0 0.0
    %822 = vmatprep.subr.mxu0 0.0
    %823 = vmatpush2.msra.mxu0 0.0
    %824 = vmatprep.subr.mxu0 0.0
    %825 = vmatpush2.msra.mxu0 0.0
    %826 = vmatprep.subr.mxu0 0.0
    %827 = vmatpush2.msra.mxu0 0.0
    %828 = vmatprep.subr.mxu0 0.0
    %829 = vmatpush2.msra.mxu0 0.0
    %830 = vmatprep.subr.mxu0 0.0
    %831 = vmatpush2.msra.mxu0 0.0
    %832 = vmatprep.subr.mxu0 0.0
    %833 = vmatpush2.msra.mxu0 0.0
    %834 = vmatprep.subr.mxu0 0.0
    %835 = vmatpush2.msra.mxu0 0.0
    %836 = vmatprep.subr.mxu0 0.0
    %837 = vmatpush2.msra.mxu0 0.0
    %838 = vmatprep.subr.mxu0 0.0
    %839 = vmatpush2.msra.mxu0 0.0
    %840 = vmatprep.subr.mxu0 0.0
    %841 = vmatpush2.msra.mxu0 0.0
    %842 = vmatprep.subr.mxu0 0.0
    %843 = vmatpush2.msra.mxu0 0.0
    %844 = vmatprep.subr.mxu0 0.0
    %845 = vmatpush2.msra.mxu0 0.0
    %846 = vmatprep.mubr.f32.mxu0 0.0
    %847 = vmatmul.mubr.f32.gmra.mxu0 %v625
    %v848 = vpop.f32.mrf.mxu0
    %v849 = vadd.f32 0.0, %v848
    %v850 = vpop.f32.mrf.mxu0
    %851 = vdwg.mxu0
    %v852 = vadd.f32 %v215, %v849
    %v853 = vmul.f32 %v852, %v105
    %v854 = vtanh.pop %v853
    %v855 = vmul.f32 %v854, %v105
    %v856 = vadd.f32 %v855, %v106
    %857 = vrot.lane.b32.xlu0 %v856, 96
    %v858 = vpop.permute.xlu0 %857
    %859 = vrot.lane.b32.xlu0 %v856, 64
    %v860 = vpop.permute.xlu0 %859
    %861 = vrot.lane.b32.xlu0 %v856, 32
    %v862 = vpop.permute.xlu0 %861
    %v863 = vmul.f32 %v858, %v623
    %v864 = vmul.f32 %v856, %v860
    %v865 = vadd.f32 %v863, %v864
    %v866 = vtanh.pop %v865
    %v867 = vmul.f32 %v862, %v866
    %868 = vmatprep.subr.mxu0 0.0
    %869 = vmatpush1.msra.mxu0 %v377
    %870 = vmatprep.subr.mxu0 0.0
    %871 = vmatpush1.msra.mxu0 %v376
    %872 = vmatprep.subr.mxu0 0.0
    %873 = vmatpush1.msra.mxu0 %v375
    %874 = vmatprep.subr.mxu0 0.0
    %875 = vmatpush1.msra.mxu0 %v374
    %876 = vmatprep.subr.mxu0 0.0
    %877 = vmatpush1.msra.mxu0 %v373
    %878 = vmatprep.subr.mxu0 0.0
    %879 = vmatpush1.msra.mxu0 %v372
    %880 = vmatprep.subr.mxu0 0.0
    %881 = vmatpush1.msra.mxu0 %v371
    %882 = vmatprep.subr.mxu0 0.0
    %883 = vmatpush1.msra.mxu0 %v370
    %884 = vmatprep.subr.mxu0 0.0
    %885 = vmatpush1.msra.mxu0 %v369
    %886 = vmatprep.subr.mxu0 0.0
    %887 = vmatpush1.msra.mxu0 %v368
    %888 = vmatprep.subr.mxu0 0.0
    %889 = vmatpush1.msra.mxu0 %v367
    %890 = vmatprep.subr.mxu0 0.0
    %891 = vmatpush1.msra.mxu0 %v366
    %892 = vmatprep.subr.mxu0 0.0
    %893 = vmatpush1.msra.mxu0 %v365
    %894 = vmatprep.subr.mxu0 0.0
    %895 = vmatpush1.msra.mxu0 %v364
    %896 = vmatprep.subr.mxu0 0.0
    %897 = vmatpush1.msra.mxu0 %v363
    %898 = vmatprep.subr.mxu0 0.0
    %899 = vmatpush1.msra.mxu0 %v362
    %900 = vmatprep.subr.mxu0 0.0
    %901 = vmatpush2.msra.mxu0 0.0
    %902 = vmatprep.subr.mxu0 0.0
    %903 = vmatpush2.msra.mxu0 0.0
    %904 = vmatprep.subr.mxu0 0.0
    %905 = vmatpush2.msra.mxu0 0.0
    %906 = vmatprep.subr.mxu0 0.0
    %907 = vmatpush2.msra.mxu0 0.0
    %908 = vmatprep.subr.mxu0 0.0
    %909 = vmatpush2.msra.mxu0 0.0
    %910 = vmatprep.subr.mxu0 0.0
    %911 = vmatpush2.msra.mxu0 0.0
    %912 = vmatprep.subr.mxu0 0.0
    %913 = vmatpush2.msra.mxu0 0.0
    %914 = vmatprep.subr.mxu0 0.0
    %915 = vmatpush2.msra.mxu0 0.0
    %916 = vmatprep.subr.mxu0 0.0
    %917 = vmatpush2.msra.mxu0 0.0
    %918 = vmatprep.subr.mxu0 0.0
    %919 = vmatpush2.msra.mxu0 0.0
    %920 = vmatprep.subr.mxu0 0.0
    %921 = vmatpush2.msra.mxu0 0.0
    %922 = vmatprep.subr.mxu0 0.0
    %923 = vmatpush2.msra.mxu0 0.0
    %924 = vmatprep.subr.mxu0 0.0
    %925 = vmatpush2.msra.mxu0 0.0
    %926 = vmatprep.subr.mxu0 0.0
    %927 = vmatpush2.msra.mxu0 0.0
    %928 = vmatprep.subr.mxu0 0.0
    %929 = vmatpush2.msra.mxu0 0.0
    %930 = vmatprep.subr.mxu0 0.0
    %931 = vmatpush2.msra.mxu0 0.0
    %932 = vmatprep.mubr.f32.mxu0 0.0
    %933 = vmatmul.mubr.f32.gmra.mxu0 %v781
    %v934 = vpop.f32.mrf.mxu0
    %v935 = vadd.f32 0.0, %v934
    %v936 = vpop.f32.mrf.mxu0
    %937 = vdwg.mxu0
    %938 = vmatprep.subr.mxu0 0.0
    %939 = vmatpush1.msra.mxu0 %v361
    %940 = vmatprep.subr.mxu0 0.0
    %941 = vmatpush1.msra.mxu0 %v360
    %942 = vmatprep.subr.mxu0 0.0
    %943 = vmatpush1.msra.mxu0 %v359
    %944 = vmatprep.subr.mxu0 0.0
    %945 = vmatpush1.msra.mxu0 %v358
    %946 = vmatprep.subr.mxu0 0.0
    %947 = vmatpush1.msra.mxu0 %v357
    %948 = vmatprep.subr.mxu0 0.0
    %949 = vmatpush1.msra.mxu0 %v356
    %950 = vmatprep.subr.mxu0 0.0
    %951 = vmatpush1.msra.mxu0 %v355
    %952 = vmatprep.subr.mxu0 0.0
    %953 = vmatpush1.msra.mxu0 %v354
    %954 = vmatprep.subr.mxu0 0.0
    %955 = vmatpush1.msra.mxu0 %v353
    %956 = vmatprep.subr.mxu0 0.0
    %957 = vmatpush1.msra.mxu0 %v352
    %958 = vmatprep.subr.mxu0 0.0
    %959 = vmatpush1.msra.mxu0 %v351
    %960 = vmatprep.subr.mxu0 0.0
    %961 = vmatpush1.msra.mxu0 %v350
    %962 = vmatprep.subr.mxu0 0.0
    %963 = vmatpush1.msra.mxu0 %v349
    %964 = vmatprep.subr.mxu0 0.0
    %965 = vmatpush1.msra.mxu0 %v348
    %966 = vmatprep.subr.mxu0 0.0
    %967 = vmatpush1.msra.mxu0 %v347
    %968 = vmatprep.subr.mxu0 0.0
    %969 = vmatpush1.msra.mxu0 %v346
    %970 = vmatprep.subr.mxu0 0.0
    %971 = vmatpush2.msra.mxu0 0.0
    %972 = vmatprep.subr.mxu0 0.0
    %973 = vmatpush2.msra.mxu0 0.0
    %974 = vmatprep.subr.mxu0 0.0
    %975 = vmatpush2.msra.mxu0 0.0
    %976 = vmatprep.subr.mxu0 0.0
    %977 = vmatpush2.msra.mxu0 0.0
    %978 = vmatprep.subr.mxu0 0.0
    %979 = vmatpush2.msra.mxu0 0.0
    %980 = vmatprep.subr.mxu0 0.0
    %981 = vmatpush2.msra.mxu0 0.0
    %982 = vmatprep.subr.mxu0 0.0
    %983 = vmatpush2.msra.mxu0 0.0
    %984 = vmatprep.subr.mxu0 0.0
    %985 = vmatpush2.msra.mxu0 0.0
    %986 = vmatprep.subr.mxu0 0.0
    %987 = vmatpush2.msra.mxu0 0.0
    %988 = vmatprep.subr.mxu0 0.0
    %989 = vmatpush2.msra.mxu0 0.0
    %990 = vmatprep.subr.mxu0 0.0
    %991 = vmatpush2.msra.mxu0 0.0
    %992 = vmatprep.subr.mxu0 0.0
    %993 = vmatpush2.msra.mxu0 0.0
    %994 = vmatprep.subr.mxu0 0.0
    %995 = vmatpush2.msra.mxu0 0.0
    %996 = vmatprep.subr.mxu0 0.0
    %997 = vmatpush2.msra.mxu0 0.0
    %998 = vmatprep.subr.mxu0 0.0
    %999 = vmatpush2.msra.mxu0 0.0
    %1000 = vmatprep.subr.mxu0 0.0
    %1001 = vmatpush2.msra.mxu0 0.0
    %1002 = vmatprep.mubr.f32.mxu0 0.0
    %1003 = vmatmul.mubr.f32.gmra.mxu0 %v867
    %v1004 = vpop.f32.mrf.mxu0
    %v1005 = vadd.f32 %v935, %v1004
    %v1006 = vpop.f32.mrf.mxu0
    %1007 = vdwg.mxu0
    %v1008 = vadd.f32 %v1005, %v522
    %v1009 = vmul.f32 %v1008, %v105
    %v1010 = vtanh.pop %v1009
    %v1011 = vmul.f32 %v1010, %v105
    %v1012 = vadd.f32 %v1011, %v106
    %1013 = vrot.lane.b32.xlu0 %v1012, 96
    %v1014 = vpop.permute.xlu0 %1013
    %1015 = vrot.lane.b32.xlu0 %v1012, 64
    %v1016 = vpop.permute.xlu0 %1015
    %1017 = vrot.lane.b32.xlu0 %v1012, 32
    %v1018 = vpop.permute.xlu0 %1017
    %v1019 = vmul.f32 %v1014, %v779
    %v1020 = vmul.f32 %v1012, %v1016
    %v1021 = vadd.f32 %v1019, %v1020
    %v1022 = vtanh.pop %v1021
    %v1023 = vmul.f32 %v1018, %v1022
    %1024 = vmatprep.subr.mxu0 0.0
    %1025 = vmatpush1.msra.mxu0 %v259
    %1026 = vmatprep.subr.mxu0 0.0
    %1027 = vmatpush1.msra.mxu0 %v258
    %1028 = vmatprep.subr.mxu0 0.0
    %1029 = vmatpush1.msra.mxu0 %v257
    %1030 = vmatprep.subr.mxu0 0.0
    %1031 = vmatpush1.msra.mxu0 %v256
    %1032 = vmatprep.subr.mxu0 0.0
    %1033 = vmatpush1.msra.mxu0 %v255
    %1034 = vmatprep.subr.mxu0 0.0
    %1035 = vmatpush1.msra.mxu0 %v254
    %1036 = vmatprep.subr.mxu0 0.0
    %1037 = vmatpush1.msra.mxu0 %v253
    %1038 = vmatprep.subr.mxu0 0.0
    %1039 = vmatpush1.msra.mxu0 %v252
    %1040 = vmatprep.subr.mxu0 0.0
    %1041 = vmatpush1.msra.mxu0 %v251
    %1042 = vmatprep.subr.mxu0 0.0
    %1043 = vmatpush1.msra.mxu0 %v250
    %1044 = vmatprep.subr.mxu0 0.0
    %1045 = vmatpush1.msra.mxu0 %v249
    %1046 = vmatprep.subr.mxu0 0.0
    %1047 = vmatpush1.msra.mxu0 %v248
    %1048 = vmatprep.subr.mxu0 0.0
    %1049 = vmatpush1.msra.mxu0 %v247
    %1050 = vmatprep.subr.mxu0 0.0
    %1051 = vmatpush1.msra.mxu0 %v246
    %1052 = vmatprep.subr.mxu0 0.0
    %1053 = vmatpush1.msra.mxu0 %v245
    %1054 = vmatprep.subr.mxu0 0.0
    %1055 = vmatpush1.msra.mxu0 %v244
    %1056 = vmatprep.subr.mxu0 0.0
    %1057 = vmatpush2.msra.mxu0 0.0
    %1058 = vmatprep.subr.mxu0 0.0
    %1059 = vmatpush2.msra.mxu0 0.0
    %1060 = vmatprep.subr.mxu0 0.0
    %1061 = vmatpush2.msra.mxu0 0.0
    %1062 = vmatprep.subr.mxu0 0.0
    %1063 = vmatpush2.msra.mxu0 0.0
    %1064 = vmatprep.subr.mxu0 0.0
    %1065 = vmatpush2.msra.mxu0 0.0
    %1066 = vmatprep.subr.mxu0 0.0
    %1067 = vmatpush2.msra.mxu0 0.0
    %1068 = vmatprep.subr.mxu0 0.0
    %1069 = vmatpush2.msra.mxu0 0.0
    %1070 = vmatprep.subr.mxu0 0.0
    %1071 = vmatpush2.msra.mxu0 0.0
    %1072 = vmatprep.subr.mxu0 0.0
    %1073 = vmatpush2.msra.mxu0 0.0
    %1074 = vmatprep.subr.mxu0 0.0
    %1075 = vmatpush2.msra.mxu0 0.0
    %1076 = vmatprep.subr.mxu0 0.0
    %1077 = vmatpush2.msra.mxu0 0.0
    %1078 = vmatprep.subr.mxu0 0.0
    %1079 = vmatpush2.msra.mxu0 0.0
    %1080 = vmatprep.subr.mxu0 0.0
    %1081 = vmatpush2.msra.mxu0 0.0
    %1082 = vmatprep.subr.mxu0 0.0
    %1083 = vmatpush2.msra.mxu0 0.0
    %1084 = vmatprep.subr.mxu0 0.0
    %1085 = vmatpush2.msra.mxu0 0.0
    %1086 = vmatprep.subr.mxu0 0.0
    %1087 = vmatpush2.msra.mxu0 0.0
    %1088 = vmatprep.mubr.f32.mxu0 0.0
    %1089 = vmatmul.mubr.f32.gmra.mxu0 %v867
    %v1090 = vpop.f32.mrf.mxu0
    %v1091 = vadd.f32 0.0, %v1090
    %v1092 = vpop.f32.mrf.mxu0
    %1093 = vdwg.mxu0
    %v1094 = vadd.f32 %v220, %v1091
    %v1095 = vmul.f32 %v1094, %v105
    %v1096 = vtanh.pop %v1095
    %v1097 = vmul.f32 %v1096, %v105
    %v1098 = vadd.f32 %v1097, %v106
    %1099 = vrot.lane.b32.xlu0 %v1098, 96
    %v1100 = vpop.permute.xlu0 %1099
    %1101 = vrot.lane.b32.xlu0 %v1098, 64
    %v1102 = vpop.permute.xlu0 %1101
    %1103 = vrot.lane.b32.xlu0 %v1098, 32
    %v1104 = vpop.permute.xlu0 %1103
    %v1105 = vmul.f32 %v1100, %v865
    %v1106 = vmul.f32 %v1098, %v1102
    %v1107 = vadd.f32 %v1105, %v1106
    %v1108 = vtanh.pop %v1107
    %v1109 = vmul.f32 %v1104, %v1108
    %1110 = vmatprep.subr.mxu0 0.0
    %1111 = vmatpush1.msra.mxu0 %v377
    %1112 = vmatprep.subr.mxu0 0.0
    %1113 = vmatpush1.msra.mxu0 %v376
    %1114 = vmatprep.subr.mxu0 0.0
    %1115 = vmatpush1.msra.mxu0 %v375
    %1116 = vmatprep.subr.mxu0 0.0
    %1117 = vmatpush1.msra.mxu0 %v374
    %1118 = vmatprep.subr.mxu0 0.0
    %1119 = vmatpush1.msra.mxu0 %v373
    %1120 = vmatprep.subr.mxu0 0.0
    %1121 = vmatpush1.msra.mxu0 %v372
    %1122 = vmatprep.subr.mxu0 0.0
    %1123 = vmatpush1.msra.mxu0 %v371
    %1124 = vmatprep.subr.mxu0 0.0
    %1125 = vmatpush1.msra.mxu0 %v370
    %1126 = vmatprep.subr.mxu0 0.0
    %1127 = vmatpush1.msra.mxu0 %v369
    %1128 = vmatprep.subr.mxu0 0.0
    %1129 = vmatpush1.msra.mxu0 %v368
    %1130 = vmatprep.subr.mxu0 0.0
    %1131 = vmatpush1.msra.mxu0 %v367
    %1132 = vmatprep.subr.mxu0 0.0
    %1133 = vmatpush1.msra.mxu0 %v366
    %1134 = vmatprep.subr.mxu0 0.0
    %1135 = vmatpush1.msra.mxu0 %v365
    %1136 = vmatprep.subr.mxu0 0.0
    %1137 = vmatpush1.msra.mxu0 %v364
    %1138 = vmatprep.subr.mxu0 0.0
    %1139 = vmatpush1.msra.mxu0 %v363
    %1140 = vmatprep.subr.mxu0 0.0
    %1141 = vmatpush1.msra.mxu0 %v362
    %1142 = vmatprep.subr.mxu0 0.0
    %1143 = vmatpush2.msra.mxu0 0.0
    %1144 = vmatprep.subr.mxu0 0.0
    %1145 = vmatpush2.msra.mxu0 0.0
    %1146 = vmatprep.subr.mxu0 0.0
    %1147 = vmatpush2.msra.mxu0 0.0
    %1148 = vmatprep.subr.mxu0 0.0
    %1149 = vmatpush2.msra.mxu0 0.0
    %1150 = vmatprep.subr.mxu0 0.0
    %1151 = vmatpush2.msra.mxu0 0.0
    %1152 = vmatprep.subr.mxu0 0.0
    %1153 = vmatpush2.msra.mxu0 0.0
    %1154 = vmatprep.subr.mxu0 0.0
    %1155 = vmatpush2.msra.mxu0 0.0
    %1156 = vmatprep.subr.mxu0 0.0
    %1157 = vmatpush2.msra.mxu0 0.0
    %1158 = vmatprep.subr.mxu0 0.0
    %1159 = vmatpush2.msra.mxu0 0.0
    %1160 = vmatprep.subr.mxu0 0.0
    %1161 = vmatpush2.msra.mxu0 0.0
    %1162 = vmatprep.subr.mxu0 0.0
    %1163 = vmatpush2.msra.mxu0 0.0
    %1164 = vmatprep.subr.mxu0 0.0
    %1165 = vmatpush2.msra.mxu0 0.0
    %1166 = vmatprep.subr.mxu0 0.0
    %1167 = vmatpush2.msra.mxu0 0.0
    %1168 = vmatprep.subr.mxu0 0.0
    %1169 = vmatpush2.msra.mxu0 0.0
    %1170 = vmatprep.subr.mxu0 0.0
    %1171 = vmatpush2.msra.mxu0 0.0
    %1172 = vmatprep.subr.mxu0 0.0
    %1173 = vmatpush2.msra.mxu0 0.0
    %1174 = vmatprep.mubr.f32.mxu0 0.0
    %1175 = vmatmul.mubr.f32.gmra.mxu0 %v1023
    %v1176 = vpop.f32.mrf.mxu0
    %v1177 = vadd.f32 0.0, %v1176
    %v1178 = vpop.f32.mrf.mxu0
    %1179 = vdwg.mxu0
    %1180 = vmatprep.subr.mxu0 0.0
    %1181 = vmatpush1.msra.mxu0 %v361
    %1182 = vmatprep.subr.mxu0 0.0
    %1183 = vmatpush1.msra.mxu0 %v360
    %1184 = vmatprep.subr.mxu0 0.0
    %1185 = vmatpush1.msra.mxu0 %v359
    %1186 = vmatprep.subr.mxu0 0.0
    %1187 = vmatpush1.msra.mxu0 %v358
    %1188 = vmatprep.subr.mxu0 0.0
    %1189 = vmatpush1.msra.mxu0 %v357
    %1190 = vmatprep.subr.mxu0 0.0
    %1191 = vmatpush1.msra.mxu0 %v356
    %1192 = vmatprep.subr.mxu0 0.0
    %1193 = vmatpush1.msra.mxu0 %v355
    %1194 = vmatprep.subr.mxu0 0.0
    %1195 = vmatpush1.msra.mxu0 %v354
    %1196 = vmatprep.subr.mxu0 0.0
    %1197 = vmatpush1.msra.mxu0 %v353
    %1198 = vmatprep.subr.mxu0 0.0
    %1199 = vmatpush1.msra.mxu0 %v352
    %1200 = vmatprep.subr.mxu0 0.0
    %1201 = vmatpush1.msra.mxu0 %v351
    %1202 = vmatprep.subr.mxu0 0.0
    %1203 = vmatpush1.msra.mxu0 %v350
    %1204 = vmatprep.subr.mxu0 0.0
    %1205 = vmatpush1.msra.mxu0 %v349
    %1206 = vmatprep.subr.mxu0 0.0
    %1207 = vmatpush1.msra.mxu0 %v348
    %1208 = vmatprep.subr.mxu0 0.0
    %1209 = vmatpush1.msra.mxu0 %v347
    %1210 = vmatprep.subr.mxu0 0.0
    %1211 = vmatpush1.msra.mxu0 %v346
    %1212 = vmatprep.subr.mxu0 0.0
    %1213 = vmatpush2.msra.mxu0 0.0
    %1214 = vmatprep.subr.mxu0 0.0
    %1215 = vmatpush2.msra.mxu0 0.0
    %1216 = vmatprep.subr.mxu0 0.0
    %1217 = vmatpush2.msra.mxu0 0.0
    %1218 = vmatprep.subr.mxu0 0.0
    %1219 = vmatpush2.msra.mxu0 0.0
    %1220 = vmatprep.subr.mxu0 0.0
    %1221 = vmatpush2.msra.mxu0 0.0
    %1222 = vmatprep.subr.mxu0 0.0
    %1223 = vmatpush2.msra.mxu0 0.0
    %1224 = vmatprep.subr.mxu0 0.0
    %1225 = vmatpush2.msra.mxu0 0.0
    %1226 = vmatprep.subr.mxu0 0.0
    %1227 = vmatpush2.msra.mxu0 0.0
    %1228 = vmatprep.subr.mxu0 0.0
    %1229 = vmatpush2.msra.mxu0 0.0
    %1230 = vmatprep.subr.mxu0 0.0
    %1231 = vmatpush2.msra.mxu0 0.0
    %1232 = vmatprep.subr.mxu0 0.0
    %1233 = vmatpush2.msra.mxu0 0.0
    %1234 = vmatprep.subr.mxu0 0.0
    %1235 = vmatpush2.msra.mxu0 0.0
    %1236 = vmatprep.subr.mxu0 0.0
    %1237 = vmatpush2.msra.mxu0 0.0
    %1238 = vmatprep.subr.mxu0 0.0
    %1239 = vmatpush2.msra.mxu0 0.0
    %1240 = vmatprep.subr.mxu0 0.0
    %1241 = vmatpush2.msra.mxu0 0.0
    %1242 = vmatprep.subr.mxu0 0.0
    %1243 = vmatpush2.msra.mxu0 0.0
    %1244 = vmatprep.mubr.f32.mxu0 0.0
    %1245 = vmatmul.mubr.f32.gmra.mxu0 %v1109
    %v1246 = vpop.f32.mrf.mxu0
    %v1247 = vadd.f32 %v1177, %v1246
    %v1248 = vpop.f32.mrf.mxu0
    %1249 = vdwg.mxu0
    %v1250 = vadd.f32 %v1247, %v522
    %v1251 = vmul.f32 %v1250, %v105
    %v1252 = vtanh.pop %v1251
    %v1253 = vmul.f32 %v1252, %v105
    %v1254 = vadd.f32 %v1253, %v106
    %1255 = vrot.lane.b32.xlu0 %v1254, 96
    %v1256 = vpop.permute.xlu0 %1255
    %1257 = vrot.lane.b32.xlu0 %v1254, 64
    %v1258 = vpop.permute.xlu0 %1257
    %1259 = vrot.lane.b32.xlu0 %v1254, 32
    %v1260 = vpop.permute.xlu0 %1259
    %v1261 = vmul.f32 %v1256, %v1021
    %v1262 = vmul.f32 %v1254, %v1258
    %v1263 = vadd.f32 %v1261, %v1262
    %v1264 = vtanh.pop %v1263
    %v1265 = vmul.f32 %v1260, %v1264
    %1266 = vmatprep.subr.mxu0 0.0
    %1267 = vmatpush1.msra.mxu0 %v259
    %1268 = vmatprep.subr.mxu0 0.0
    %1269 = vmatpush1.msra.mxu0 %v258
    %1270 = vmatprep.subr.mxu0 0.0
    %1271 = vmatpush1.msra.mxu0 %v257
    %1272 = vmatprep.subr.mxu0 0.0
    %1273 = vmatpush1.msra.mxu0 %v256
    %1274 = vmatprep.subr.mxu0 0.0
    %1275 = vmatpush1.msra.mxu0 %v255
    %1276 = vmatprep.subr.mxu0 0.0
    %1277 = vmatpush1.msra.mxu0 %v254
    %1278 = vmatprep.subr.mxu0 0.0
    %1279 = vmatpush1.msra.mxu0 %v253
    %1280 = vmatprep.subr.mxu0 0.0
    %1281 = vmatpush1.msra.mxu0 %v252
    %1282 = vmatprep.subr.mxu0 0.0
    %1283 = vmatpush1.msra.mxu0 %v251
    %1284 = vmatprep.subr.mxu0 0.0
    %1285 = vmatpush1.msra.mxu0 %v250
    %1286 = vmatprep.subr.mxu0 0.0
    %1287 = vmatpush1.msra.mxu0 %v249
    %1288 = vmatprep.subr.mxu0 0.0
    %1289 = vmatpush1.msra.mxu0 %v248
    %1290 = vmatprep.subr.mxu0 0.0
    %1291 = vmatpush1.msra.mxu0 %v247
    %1292 = vmatprep.subr.mxu0 0.0
    %1293 = vmatpush1.msra.mxu0 %v246
    %1294 = vmatprep.subr.mxu0 0.0
    %1295 = vmatpush1.msra.mxu0 %v245
    %1296 = vmatprep.subr.mxu0 0.0
    %1297 = vmatpush1.msra.mxu0 %v244
    %1298 = vmatprep.subr.mxu0 0.0
    %1299 = vmatpush2.msra.mxu0 0.0
    %1300 = vmatprep.subr.mxu0 0.0
    %1301 = vmatpush2.msra.mxu0 0.0
    %1302 = vmatprep.subr.mxu0 0.0
    %1303 = vmatpush2.msra.mxu0 0.0
    %1304 = vmatprep.subr.mxu0 0.0
    %1305 = vmatpush2.msra.mxu0 0.0
    %1306 = vmatprep.subr.mxu0 0.0
    %1307 = vmatpush2.msra.mxu0 0.0
    %1308 = vmatprep.subr.mxu0 0.0
    %1309 = vmatpush2.msra.mxu0 0.0
    %1310 = vmatprep.subr.mxu0 0.0
    %1311 = vmatpush2.msra.mxu0 0.0
    %1312 = vmatprep.subr.mxu0 0.0
    %1313 = vmatpush2.msra.mxu0 0.0
    %1314 = vmatprep.subr.mxu0 0.0
    %1315 = vmatpush2.msra.mxu0 0.0
    %1316 = vmatprep.subr.mxu0 0.0
    %1317 = vmatpush2.msra.mxu0 0.0
    %1318 = vmatprep.subr.mxu0 0.0
    %1319 = vmatpush2.msra.mxu0 0.0
    %1320 = vmatprep.subr.mxu0 0.0
    %1321 = vmatpush2.msra.mxu0 0.0
    %1322 = vmatprep.subr.mxu0 0.0
    %1323 = vmatpush2.msra.mxu0 0.0
    %1324 = vmatprep.subr.mxu0 0.0
    %1325 = vmatpush2.msra.mxu0 0.0
    %1326 = vmatprep.subr.mxu0 0.0
    %1327 = vmatpush2.msra.mxu0 0.0
    %1328 = vmatprep.subr.mxu0 0.0
    %1329 = vmatpush2.msra.mxu0 0.0
    %1330 = vmatprep.mubr.f32.mxu0 0.0
    %1331 = vmatmul.mubr.f32.gmra.mxu0 %v1109
    %v1332 = vpop.f32.mrf.mxu0
    %v1333 = vadd.f32 0.0, %v1332
    %v1334 = vpop.f32.mrf.mxu0
    %1335 = vdwg.mxu0
    %v1336 = vadd.f32 %v225, %v1333
    %v1337 = vmul.f32 %v1336, %v105
    %v1338 = vtanh.pop %v1337
    %v1339 = vmul.f32 %v1338, %v105
    %v1340 = vadd.f32 %v1339, %v106
    %1341 = vrot.lane.b32.xlu0 %v1340, 96
    %v1342 = vpop.permute.xlu0 %1341
    %1343 = vrot.lane.b32.xlu0 %v1340, 64
    %v1344 = vpop.permute.xlu0 %1343
    %1345 = vrot.lane.b32.xlu0 %v1340, 32
    %v1346 = vpop.permute.xlu0 %1345
    %v1347 = vmul.f32 %v1342, %v1107
    %v1348 = vmul.f32 %v1340, %v1344
    %v1349 = vadd.f32 %v1347, %v1348
    %v1350 = vtanh.pop %v1349
    %v1351 = vmul.f32 %v1346, %v1350
    %1352 = vmatprep.subr.mxu0 0.0
    %1353 = vmatpush1.msra.mxu0 %v377
    %1354 = vmatprep.subr.mxu0 0.0
    %1355 = vmatpush1.msra.mxu0 %v376
    %1356 = vmatprep.subr.mxu0 0.0
    %1357 = vmatpush1.msra.mxu0 %v375
    %1358 = vmatprep.subr.mxu0 0.0
    %1359 = vmatpush1.msra.mxu0 %v374
    %1360 = vmatprep.subr.mxu0 0.0
    %1361 = vmatpush1.msra.mxu0 %v373
    %1362 = vmatprep.subr.mxu0 0.0
    %1363 = vmatpush1.msra.mxu0 %v372
    %1364 = vmatprep.subr.mxu0 0.0
    %1365 = vmatpush1.msra.mxu0 %v371
    %1366 = vmatprep.subr.mxu0 0.0
    %1367 = vmatpush1.msra.mxu0 %v370
    %1368 = vmatprep.subr.mxu0 0.0
    %1369 = vmatpush1.msra.mxu0 %v369
    %1370 = vmatprep.subr.mxu0 0.0
    %1371 = vmatpush1.msra.mxu0 %v368
    %1372 = vmatprep.subr.mxu0 0.0
    %1373 = vmatpush1.msra.mxu0 %v367
    %1374 = vmatprep.subr.mxu0 0.0
    %1375 = vmatpush1.msra.mxu0 %v366
    %1376 = vmatprep.subr.mxu0 0.0
    %1377 = vmatpush1.msra.mxu0 %v365
    %1378 = vmatprep.subr.mxu0 0.0
    %1379 = vmatpush1.msra.mxu0 %v364
    %1380 = vmatprep.subr.mxu0 0.0
    %1381 = vmatpush1.msra.mxu0 %v363
    %1382 = vmatprep.subr.mxu0 0.0
    %1383 = vmatpush1.msra.mxu0 %v362
    %1384 = vmatprep.subr.mxu0 0.0
    %1385 = vmatpush2.msra.mxu0 0.0
    %1386 = vmatprep.subr.mxu0 0.0
    %1387 = vmatpush2.msra.mxu0 0.0
    %1388 = vmatprep.subr.mxu0 0.0
    %1389 = vmatpush2.msra.mxu0 0.0
    %1390 = vmatprep.subr.mxu0 0.0
    %1391 = vmatpush2.msra.mxu0 0.0
    %1392 = vmatprep.subr.mxu0 0.0
    %1393 = vmatpush2.msra.mxu0 0.0
    %1394 = vmatprep.subr.mxu0 0.0
    %1395 = vmatpush2.msra.mxu0 0.0
    %1396 = vmatprep.subr.mxu0 0.0
    %1397 = vmatpush2.msra.mxu0 0.0
    %1398 = vmatprep.subr.mxu0 0.0
    %1399 = vmatpush2.msra.mxu0 0.0
    %1400 = vmatprep.subr.mxu0 0.0
    %1401 = vmatpush2.msra.mxu0 0.0
    %1402 = vmatprep.subr.mxu0 0.0
    %1403 = vmatpush2.msra.mxu0 0.0
    %1404 = vmatprep.subr.mxu0 0.0
    %1405 = vmatpush2.msra.mxu0 0.0
    %1406 = vmatprep.subr.mxu0 0.0
    %1407 = vmatpush2.msra.mxu0 0.0
    %1408 = vmatprep.subr.mxu0 0.0
    %1409 = vmatpush2.msra.mxu0 0.0
    %1410 = vmatprep.subr.mxu0 0.0
    %1411 = vmatpush2.msra.mxu0 0.0
    %1412 = vmatprep.subr.mxu0 0.0
    %1413 = vmatpush2.msra.mxu0 0.0
    %1414 = vmatprep.subr.mxu0 0.0
    %1415 = vmatpush2.msra.mxu0 0.0
    %1416 = vmatprep.mubr.f32.mxu0 0.0
    %1417 = vmatmul.mubr.f32.gmra.mxu0 %v1265
    %v1418 = vpop.f32.mrf.mxu0
    %v1419 = vadd.f32 0.0, %v1418
    %v1420 = vpop.f32.mrf.mxu0
    %1421 = vdwg.mxu0
    %1422 = vmatprep.subr.mxu0 0.0
    %1423 = vmatpush1.msra.mxu0 %v361
    %1424 = vmatprep.subr.mxu0 0.0
    %1425 = vmatpush1.msra.mxu0 %v360
    %1426 = vmatprep.subr.mxu0 0.0
    %1427 = vmatpush1.msra.mxu0 %v359
    %1428 = vmatprep.subr.mxu0 0.0
    %1429 = vmatpush1.msra.mxu0 %v358
    %1430 = vmatprep.subr.mxu0 0.0
    %1431 = vmatpush1.msra.mxu0 %v357
    %1432 = vmatprep.subr.mxu0 0.0
    %1433 = vmatpush1.msra.mxu0 %v356
    %1434 = vmatprep.subr.mxu0 0.0
    %1435 = vmatpush1.msra.mxu0 %v355
    %1436 = vmatprep.subr.mxu0 0.0
    %1437 = vmatpush1.msra.mxu0 %v354
    %1438 = vmatprep.subr.mxu0 0.0
    %1439 = vmatpush1.msra.mxu0 %v353
    %1440 = vmatprep.subr.mxu0 0.0
    %1441 = vmatpush1.msra.mxu0 %v352
    %1442 = vmatprep.subr.mxu0 0.0
    %1443 = vmatpush1.msra.mxu0 %v351
    %1444 = vmatprep.subr.mxu0 0.0
    %1445 = vmatpush1.msra.mxu0 %v350
    %1446 = vmatprep.subr.mxu0 0.0
    %1447 = vmatpush1.msra.mxu0 %v349
    %1448 = vmatprep.subr.mxu0 0.0
    %1449 = vmatpush1.msra.mxu0 %v348
    %1450 = vmatprep.subr.mxu0 0.0
    %1451 = vmatpush1.msra.mxu0 %v347
    %1452 = vmatprep.subr.mxu0 0.0
    %1453 = vmatpush1.msra.mxu0 %v346
    %1454 = vmatprep.subr.mxu0 0.0
    %1455 = vmatpush2.msra.mxu0 0.0
    %1456 = vmatprep.subr.mxu0 0.0
    %1457 = vmatpush2.msra.mxu0 0.0
    %1458 = vmatprep.subr.mxu0 0.0
    %1459 = vmatpush2.msra.mxu0 0.0
    %1460 = vmatprep.subr.mxu0 0.0
    %1461 = vmatpush2.msra.mxu0 0.0
    %1462 = vmatprep.subr.mxu0 0.0
    %1463 = vmatpush2.msra.mxu0 0.0
    %1464 = vmatprep.subr.mxu0 0.0
    %1465 = vmatpush2.msra.mxu0 0.0
    %1466 = vmatprep.subr.mxu0 0.0
    %1467 = vmatpush2.msra.mxu0 0.0
    %1468 = vmatprep.subr.mxu0 0.0
    %1469 = vmatpush2.msra.mxu0 0.0
    %1470 = vmatprep.subr.mxu0 0.0
    %1471 = vmatpush2.msra.mxu0 0.0
    %1472 = vmatprep.subr.mxu0 0.0
    %1473 = vmatpush2.msra.mxu0 0.0
    %1474 = vmatprep.subr.mxu0 0.0
    %1475 = vmatpush2.msra.mxu0 0.0
    %1476 = vmatprep.subr.mxu0 0.0
    %1477 = vmatpush2.msra.mxu0 0.0
    %1478 = vmatprep.subr.mxu0 0.0
    %1479 = vmatpush2.msra.mxu0 0.0
    %1480 = vmatprep.subr.mxu0 0.0
    %1481 = vmatpush2.msra.mxu0 0.0
    %1482 = vmatprep.subr.mxu0 0.0
    %1483 = vmatpush2.msra.mxu0 0.0
    %1484 = vmatprep.subr.mxu0 0.0
    %1485 = vmatpush2.msra.mxu0 0.0
    %1486 = vmatprep.mubr.f32.mxu0 0.0
    %1487 = vmatmul.mubr.f32.gmra.mxu0 %v1351
    %v1488 = vpop.f32.mrf.mxu0
    %v1489 = vadd.f32 %v1419, %v1488
    %v1490 = vpop.f32.mrf.mxu0
    %1491 = vdwg.mxu0
    %v1492 = vadd.f32 %v1489, %v522
    %v1493 = vmul.f32 %v1492, %v105
    %v1494 = vtanh.pop %v1493
    %v1495 = vmul.f32 %v1494, %v105
    %v1496 = vadd.f32 %v1495, %v106
    %1497 = vrot.lane.b32.xlu0 %v1496, 96
    %v1498 = vpop.permute.xlu0 %1497
    %1499 = vrot.lane.b32.xlu0 %v1496, 64
    %v1500 = vpop.permute.xlu0 %1499
    %1501 = vrot.lane.b32.xlu0 %v1496, 32
    %v1502 = vpop.permute.xlu0 %1501
    %v1503 = vmul.f32 %v1498, %v1263
    %v1504 = vmul.f32 %v1496, %v1500
    %v1505 = vadd.f32 %v1503, %v1504
    %v1506 = vtanh.pop %v1505
    %v1507 = vmul.f32 %v1502, %v1506
    %1508 = vmatprep.subr.mxu0 0.0
    %1509 = vmatpush1.msra.mxu0 %v259
    %1510 = vmatprep.subr.mxu0 0.0
    %1511 = vmatpush1.msra.mxu0 %v258
    %1512 = vmatprep.subr.mxu0 0.0
    %1513 = vmatpush1.msra.mxu0 %v257
    %1514 = vmatprep.subr.mxu0 0.0
    %1515 = vmatpush1.msra.mxu0 %v256
    %1516 = vmatprep.subr.mxu0 0.0
    %1517 = vmatpush1.msra.mxu0 %v255
    %1518 = vmatprep.subr.mxu0 0.0
    %1519 = vmatpush1.msra.mxu0 %v254
    %1520 = vmatprep.subr.mxu0 0.0
    %1521 = vmatpush1.msra.mxu0 %v253
    %1522 = vmatprep.subr.mxu0 0.0
    %1523 = vmatpush1.msra.mxu0 %v252
    %1524 = vmatprep.subr.mxu0 0.0
    %1525 = vmatpush1.msra.mxu0 %v251
    %1526 = vmatprep.subr.mxu0 0.0
    %1527 = vmatpush1.msra.mxu0 %v250
    %1528 = vmatprep.subr.mxu0 0.0
    %1529 = vmatpush1.msra.mxu0 %v249
    %1530 = vmatprep.subr.mxu0 0.0
    %1531 = vmatpush1.msra.mxu0 %v248
    %1532 = vmatprep.subr.mxu0 0.0
    %1533 = vmatpush1.msra.mxu0 %v247
    %1534 = vmatprep.subr.mxu0 0.0
    %1535 = vmatpush1.msra.mxu0 %v246
    %1536 = vmatprep.subr.mxu0 0.0
    %1537 = vmatpush1.msra.mxu0 %v245
    %1538 = vmatprep.subr.mxu0 0.0
    %1539 = vmatpush1.msra.mxu0 %v244
    %1540 = vmatprep.subr.mxu0 0.0
    %1541 = vmatpush2.msra.mxu0 0.0
    %1542 = vmatprep.subr.mxu0 0.0
    %1543 = vmatpush2.msra.mxu0 0.0
    %1544 = vmatprep.subr.mxu0 0.0
    %1545 = vmatpush2.msra.mxu0 0.0
    %1546 = vmatprep.subr.mxu0 0.0
    %1547 = vmatpush2.msra.mxu0 0.0
    %1548 = vmatprep.subr.mxu0 0.0
    %1549 = vmatpush2.msra.mxu0 0.0
    %1550 = vmatprep.subr.mxu0 0.0
    %1551 = vmatpush2.msra.mxu0 0.0
    %1552 = vmatprep.subr.mxu0 0.0
    %1553 = vmatpush2.msra.mxu0 0.0
    %1554 = vmatprep.subr.mxu0 0.0
    %1555 = vmatpush2.msra.mxu0 0.0
    %1556 = vmatprep.subr.mxu0 0.0
    %1557 = vmatpush2.msra.mxu0 0.0
    %1558 = vmatprep.subr.mxu0 0.0
    %1559 = vmatpush2.msra.mxu0 0.0
    %1560 = vmatprep.subr.mxu0 0.0
    %1561 = vmatpush2.msra.mxu0 0.0
    %1562 = vmatprep.subr.mxu0 0.0
    %1563 = vmatpush2.msra.mxu0 0.0
    %1564 = vmatprep.subr.mxu0 0.0
    %1565 = vmatpush2.msra.mxu0 0.0
    %1566 = vmatprep.subr.mxu0 0.0
    %1567 = vmatpush2.msra.mxu0 0.0
    %1568 = vmatprep.subr.mxu0 0.0
    %1569 = vmatpush2.msra.mxu0 0.0
    %1570 = vmatprep.subr.mxu0 0.0
    %1571 = vmatpush2.msra.mxu0 0.0
    %1572 = vmatprep.mubr.f32.mxu0 0.0
    %1573 = vmatmul.mubr.f32.gmra.mxu0 %v1351
    %v1574 = vpop.f32.mrf.mxu0
    %v1575 = vadd.f32 0.0, %v1574
    %v1576 = vpop.f32.mrf.mxu0
    %1577 = vdwg.mxu0
    %v1578 = vadd.f32 %v230, %v1575
    %v1579 = vmul.f32 %v1578, %v105
    %v1580 = vtanh.pop %v1579
    %v1581 = vmul.f32 %v1580, %v105
    %v1582 = vadd.f32 %v1581, %v106
    %1583 = vrot.lane.b32.xlu0 %v1582, 96
    %v1584 = vpop.permute.xlu0 %1583
    %1585 = vrot.lane.b32.xlu0 %v1582, 64
    %v1586 = vpop.permute.xlu0 %1585
    %1587 = vrot.lane.b32.xlu0 %v1582, 32
    %v1588 = vpop.permute.xlu0 %1587
    %v1589 = vmul.f32 %v1584, %v1349
    %v1590 = vmul.f32 %v1582, %v1586
    %v1591 = vadd.f32 %v1589, %v1590
    %v1592 = vtanh.pop %v1591
    %v1593 = vmul.f32 %v1588, %v1592
    %1594 = vmatprep.subr.mxu0 0.0
    %1595 = vmatpush1.msra.mxu0 %v377
    %1596 = vmatprep.subr.mxu0 0.0
    %1597 = vmatpush1.msra.mxu0 %v376
    %1598 = vmatprep.subr.mxu0 0.0
    %1599 = vmatpush1.msra.mxu0 %v375
    %1600 = vmatprep.subr.mxu0 0.0
    %1601 = vmatpush1.msra.mxu0 %v374
    %1602 = vmatprep.subr.mxu0 0.0
    %1603 = vmatpush1.msra.mxu0 %v373
    %1604 = vmatprep.subr.mxu0 0.0
    %1605 = vmatpush1.msra.mxu0 %v372
    %1606 = vmatprep.subr.mxu0 0.0
    %1607 = vmatpush1.msra.mxu0 %v371
    %1608 = vmatprep.subr.mxu0 0.0
    %1609 = vmatpush1.msra.mxu0 %v370
    %1610 = vmatprep.subr.mxu0 0.0
    %1611 = vmatpush1.msra.mxu0 %v369
    %1612 = vmatprep.subr.mxu0 0.0
    %1613 = vmatpush1.msra.mxu0 %v368
    %1614 = vmatprep.subr.mxu0 0.0
    %1615 = vmatpush1.msra.mxu0 %v367
    %1616 = vmatprep.subr.mxu0 0.0
    %1617 = vmatpush1.msra.mxu0 %v366
    %1618 = vmatprep.subr.mxu0 0.0
    %1619 = vmatpush1.msra.mxu0 %v365
    %1620 = vmatprep.subr.mxu0 0.0
    %1621 = vmatpush1.msra.mxu0 %v364
    %1622 = vmatprep.subr.mxu0 0.0
    %1623 = vmatpush1.msra.mxu0 %v363
    %1624 = vmatprep.subr.mxu0 0.0
    %1625 = vmatpush1.msra.mxu0 %v362
    %1626 = vmatprep.subr.mxu0 0.0
    %1627 = vmatpush2.msra.mxu0 0.0
    %1628 = vmatprep.subr.mxu0 0.0
    %1629 = vmatpush2.msra.mxu0 0.0
    %1630 = vmatprep.subr.mxu0 0.0
    %1631 = vmatpush2.msra.mxu0 0.0
    %1632 = vmatprep.subr.mxu0 0.0
    %1633 = vmatpush2.msra.mxu0 0.0
    %1634 = vmatprep.subr.mxu0 0.0
    %1635 = vmatpush2.msra.mxu0 0.0
    %1636 = vmatprep.subr.mxu0 0.0
    %1637 = vmatpush2.msra.mxu0 0.0
    %1638 = vmatprep.subr.mxu0 0.0
    %1639 = vmatpush2.msra.mxu0 0.0
    %1640 = vmatprep.subr.mxu0 0.0
    %1641 = vmatpush2.msra.mxu0 0.0
    %1642 = vmatprep.subr.mxu0 0.0
    %1643 = vmatpush2.msra.mxu0 0.0
    %1644 = vmatprep.subr.mxu0 0.0
    %1645 = vmatpush2.msra.mxu0 0.0
    %1646 = vmatprep.subr.mxu0 0.0
    %1647 = vmatpush2.msra.mxu0 0.0
    %1648 = vmatprep.subr.mxu0 0.0
    %1649 = vmatpush2.msra.mxu0 0.0
    %1650 = vmatprep.subr.mxu0 0.0
    %1651 = vmatpush2.msra.mxu0 0.0
    %1652 = vmatprep.subr.mxu0 0.0
    %1653 = vmatpush2.msra.mxu0 0.0
    %1654 = vmatprep.subr.mxu0 0.0
    %1655 = vmatpush2.msra.mxu0 0.0
    %1656 = vmatprep.subr.mxu0 0.0
    %1657 = vmatpush2.msra.mxu0 0.0
    %1658 = vmatprep.mubr.f32.mxu0 0.0
    %1659 = vmatmul.mubr.f32.gmra.mxu0 %v1507
    %v1660 = vpop.f32.mrf.mxu0
    %v1661 = vadd.f32 0.0, %v1660
    %v1662 = vpop.f32.mrf.mxu0
    %1663 = vdwg.mxu0
    %1664 = vmatprep.subr.mxu0 0.0
    %1665 = vmatpush1.msra.mxu0 %v361
    %1666 = vmatprep.subr.mxu0 0.0
    %1667 = vmatpush1.msra.mxu0 %v360
    %1668 = vmatprep.subr.mxu0 0.0
    %1669 = vmatpush1.msra.mxu0 %v359
    %1670 = vmatprep.subr.mxu0 0.0
    %1671 = vmatpush1.msra.mxu0 %v358
    %1672 = vmatprep.subr.mxu0 0.0
    %1673 = vmatpush1.msra.mxu0 %v357
    %1674 = vmatprep.subr.mxu0 0.0
    %1675 = vmatpush1.msra.mxu0 %v356
    %1676 = vmatprep.subr.mxu0 0.0
    %1677 = vmatpush1.msra.mxu0 %v355
    %1678 = vmatprep.subr.mxu0 0.0
    %1679 = vmatpush1.msra.mxu0 %v354
    %1680 = vmatprep.subr.mxu0 0.0
    %1681 = vmatpush1.msra.mxu0 %v353
    %1682 = vmatprep.subr.mxu0 0.0
    %1683 = vmatpush1.msra.mxu0 %v352
    %1684 = vmatprep.subr.mxu0 0.0
    %1685 = vmatpush1.msra.mxu0 %v351
    %1686 = vmatprep.subr.mxu0 0.0
    %1687 = vmatpush1.msra.mxu0 %v350
    %1688 = vmatprep.subr.mxu0 0.0
    %1689 = vmatpush1.msra.mxu0 %v349
    %1690 = vmatprep.subr.mxu0 0.0
    %1691 = vmatpush1.msra.mxu0 %v348
    %1692 = vmatprep.subr.mxu0 0.0
    %1693 = vmatpush1.msra.mxu0 %v347
    %1694 = vmatprep.subr.mxu0 0.0
    %1695 = vmatpush1.msra.mxu0 %v346
    %1696 = vmatprep.subr.mxu0 0.0
    %1697 = vmatpush2.msra.mxu0 0.0
    %1698 = vmatprep.subr.mxu0 0.0
    %1699 = vmatpush2.msra.mxu0 0.0
    %1700 = vmatprep.subr.mxu0 0.0
    %1701 = vmatpush2.msra.mxu0 0.0
    %1702 = vmatprep.subr.mxu0 0.0
    %1703 = vmatpush2.msra.mxu0 0.0
    %1704 = vmatprep.subr.mxu0 0.0
    %1705 = vmatpush2.msra.mxu0 0.0
    %1706 = vmatprep.subr.mxu0 0.0
    %1707 = vmatpush2.msra.mxu0 0.0
    %1708 = vmatprep.subr.mxu0 0.0
    %1709 = vmatpush2.msra.mxu0 0.0
    %1710 = vmatprep.subr.mxu0 0.0
    %1711 = vmatpush2.msra.mxu0 0.0
    %1712 = vmatprep.subr.mxu0 0.0
    %1713 = vmatpush2.msra.mxu0 0.0
    %1714 = vmatprep.subr.mxu0 0.0
    %1715 = vmatpush2.msra.mxu0 0.0
    %1716 = vmatprep.subr.mxu0 0.0
    %1717 = vmatpush2.msra.mxu0 0.0
    %1718 = vmatprep.subr.mxu0 0.0
    %1719 = vmatpush2.msra.mxu0 0.0
    %1720 = vmatprep.subr.mxu0 0.0
    %1721 = vmatpush2.msra.mxu0 0.0
    %1722 = vmatprep.subr.mxu0 0.0
    %1723 = vmatpush2.msra.mxu0 0.0
    %1724 = vmatprep.subr.mxu0 0.0
    %1725 = vmatpush2.msra.mxu0 0.0
    %1726 = vmatprep.subr.mxu0 0.0
    %1727 = vmatpush2.msra.mxu0 0.0
    %1728 = vmatprep.mubr.f32.mxu0 0.0
    %1729 = vmatmul.mubr.f32.gmra.mxu0 %v1593
    %v1730 = vpop.f32.mrf.mxu0
    %v1731 = vadd.f32 %v1661, %v1730
    %v1732 = vpop.f32.mrf.mxu0
    %1733 = vdwg.mxu0
    %v1734 = vadd.f32 %v1731, %v522
    %v1735 = vmul.f32 %v1734, %v105
    %v1736 = vtanh.pop %v1735
    %v1737 = vmul.f32 %v1736, %v105
    %v1738 = vadd.f32 %v1737, %v106
    %1739 = vrot.lane.b32.xlu0 %v1738, 96
    %v1740 = vpop.permute.xlu0 %1739
    %1741 = vrot.lane.b32.xlu0 %v1738, 64
    %v1742 = vpop.permute.xlu0 %1741
    %1743 = vrot.lane.b32.xlu0 %v1738, 32
    %v1744 = vpop.permute.xlu0 %1743
    %v1745 = vmul.f32 %v1740, %v1505
    %v1746 = vmul.f32 %v1738, %v1742
    %v1747 = vadd.f32 %v1745, %v1746
    %v1748 = vtanh.pop %v1747
    %v1749 = vmul.f32 %v1744, %v1748
    %1750 = vmatprep.subr.mxu0 0.0
    %1751 = vmatpush1.msra.mxu0 %v259
    %1752 = vmatprep.subr.mxu0 0.0
    %1753 = vmatpush1.msra.mxu0 %v258
    %1754 = vmatprep.subr.mxu0 0.0
    %1755 = vmatpush1.msra.mxu0 %v257
    %1756 = vmatprep.subr.mxu0 0.0
    %1757 = vmatpush1.msra.mxu0 %v256
    %1758 = vmatprep.subr.mxu0 0.0
    %1759 = vmatpush1.msra.mxu0 %v255
    %1760 = vmatprep.subr.mxu0 0.0
    %1761 = vmatpush1.msra.mxu0 %v254
    %1762 = vmatprep.subr.mxu0 0.0
    %1763 = vmatpush1.msra.mxu0 %v253
    %1764 = vmatprep.subr.mxu0 0.0
    %1765 = vmatpush1.msra.mxu0 %v252
    %1766 = vmatprep.subr.mxu0 0.0
    %1767 = vmatpush1.msra.mxu0 %v251
    %1768 = vmatprep.subr.mxu0 0.0
    %1769 = vmatpush1.msra.mxu0 %v250
    %1770 = vmatprep.subr.mxu0 0.0
    %1771 = vmatpush1.msra.mxu0 %v249
    %1772 = vmatprep.subr.mxu0 0.0
    %1773 = vmatpush1.msra.mxu0 %v248
    %1774 = vmatprep.subr.mxu0 0.0
    %1775 = vmatpush1.msra.mxu0 %v247
    %1776 = vmatprep.subr.mxu0 0.0
    %1777 = vmatpush1.msra.mxu0 %v246
    %1778 = vmatprep.subr.mxu0 0.0
    %1779 = vmatpush1.msra.mxu0 %v245
    %1780 = vmatprep.subr.mxu0 0.0
    %1781 = vmatpush1.msra.mxu0 %v244
    %1782 = vmatprep.subr.mxu0 0.0
    %1783 = vmatpush2.msra.mxu0 0.0
    %1784 = vmatprep.subr.mxu0 0.0
    %1785 = vmatpush2.msra.mxu0 0.0
    %1786 = vmatprep.subr.mxu0 0.0
    %1787 = vmatpush2.msra.mxu0 0.0
    %1788 = vmatprep.subr.mxu0 0.0
    %1789 = vmatpush2.msra.mxu0 0.0
    %1790 = vmatprep.subr.mxu0 0.0
    %1791 = vmatpush2.msra.mxu0 0.0
    %1792 = vmatprep.subr.mxu0 0.0
    %1793 = vmatpush2.msra.mxu0 0.0
    %1794 = vmatprep.subr.mxu0 0.0
    %1795 = vmatpush2.msra.mxu0 0.0
    %1796 = vmatprep.subr.mxu0 0.0
    %1797 = vmatpush2.msra.mxu0 0.0
    %1798 = vmatprep.subr.mxu0 0.0
    %1799 = vmatpush2.msra.mxu0 0.0
    %1800 = vmatprep.subr.mxu0 0.0
    %1801 = vmatpush2.msra.mxu0 0.0
    %1802 = vmatprep.subr.mxu0 0.0
    %1803 = vmatpush2.msra.mxu0 0.0
    %1804 = vmatprep.subr.mxu0 0.0
    %1805 = vmatpush2.msra.mxu0 0.0
    %1806 = vmatprep.subr.mxu0 0.0
    %1807 = vmatpush2.msra.mxu0 0.0
    %1808 = vmatprep.subr.mxu0 0.0
    %1809 = vmatpush2.msra.mxu0 0.0
    %1810 = vmatprep.subr.mxu0 0.0
    %1811 = vmatpush2.msra.mxu0 0.0
    %1812 = vmatprep.subr.mxu0 0.0
    %1813 = vmatpush2.msra.mxu0 0.0
    %1814 = vmatprep.mubr.f32.mxu0 0.0
    %1815 = vmatmul.mubr.f32.gmra.mxu0 %v1593
    %v1816 = vpop.f32.mrf.mxu0
    %v1817 = vadd.f32 0.0, %v1816
    %v1818 = vpop.f32.mrf.mxu0
    %1819 = vdwg.mxu0
    %v1820 = vadd.f32 %v235, %v1817
    %v1821 = vmul.f32 %v1820, %v105
    %v1822 = vtanh.pop %v1821
    %v1823 = vmul.f32 %v1822, %v105
    %v1824 = vadd.f32 %v1823, %v106
    %1825 = vrot.lane.b32.xlu0 %v1824, 96
    %v1826 = vpop.permute.xlu0 %1825
    %1827 = vrot.lane.b32.xlu0 %v1824, 64
    %v1828 = vpop.permute.xlu0 %1827
    %1829 = vrot.lane.b32.xlu0 %v1824, 32
    %v1830 = vpop.permute.xlu0 %1829
    %v1831 = vmul.f32 %v1826, %v1591
    %v1832 = vmul.f32 %v1824, %v1828
    %v1833 = vadd.f32 %v1831, %v1832
    %v1834 = vtanh.pop %v1833
    %v1835 = vmul.f32 %v1830, %v1834
    %1836 = vmatprep.subr.mxu0 0.0
    %1837 = vmatpush1.msra.mxu0 %v377
    %1838 = vmatprep.subr.mxu0 0.0
    %1839 = vmatpush1.msra.mxu0 %v376
    %1840 = vmatprep.subr.mxu0 0.0
    %1841 = vmatpush1.msra.mxu0 %v375
    %1842 = vmatprep.subr.mxu0 0.0
    %1843 = vmatpush1.msra.mxu0 %v374
    %1844 = vmatprep.subr.mxu0 0.0
    %1845 = vmatpush1.msra.mxu0 %v373
    %1846 = vmatprep.subr.mxu0 0.0
    %1847 = vmatpush1.msra.mxu0 %v372
    %1848 = vmatprep.subr.mxu0 0.0
    %1849 = vmatpush1.msra.mxu0 %v371
    %1850 = vmatprep.subr.mxu0 0.0
    %1851 = vmatpush1.msra.mxu0 %v370
    %1852 = vmatprep.subr.mxu0 0.0
    %1853 = vmatpush1.msra.mxu0 %v369
    %1854 = vmatprep.subr.mxu0 0.0
    %1855 = vmatpush1.msra.mxu0 %v368
    %1856 = vmatprep.subr.mxu0 0.0
    %1857 = vmatpush1.msra.mxu0 %v367
    %1858 = vmatprep.subr.mxu0 0.0
    %1859 = vmatpush1.msra.mxu0 %v366
    %1860 = vmatprep.subr.mxu0 0.0
    %1861 = vmatpush1.msra.mxu0 %v365
    %1862 = vmatprep.subr.mxu0 0.0
    %1863 = vmatpush1.msra.mxu0 %v364
    %1864 = vmatprep.subr.mxu0 0.0
    %1865 = vmatpush1.msra.mxu0 %v363
    %1866 = vmatprep.subr.mxu0 0.0
    %1867 = vmatpush1.msra.mxu0 %v362
    %1868 = vmatprep.subr.mxu0 0.0
    %1869 = vmatpush2.msra.mxu0 0.0
    %1870 = vmatprep.subr.mxu0 0.0
    %1871 = vmatpush2.msra.mxu0 0.0
    %1872 = vmatprep.subr.mxu0 0.0
    %1873 = vmatpush2.msra.mxu0 0.0
    %1874 = vmatprep.subr.mxu0 0.0
    %1875 = vmatpush2.msra.mxu0 0.0
    %1876 = vmatprep.subr.mxu0 0.0
    %1877 = vmatpush2.msra.mxu0 0.0
    %1878 = vmatprep.subr.mxu0 0.0
    %1879 = vmatpush2.msra.mxu0 0.0
    %1880 = vmatprep.subr.mxu0 0.0
    %1881 = vmatpush2.msra.mxu0 0.0
    %1882 = vmatprep.subr.mxu0 0.0
    %1883 = vmatpush2.msra.mxu0 0.0
    %1884 = vmatprep.subr.mxu0 0.0
    %1885 = vmatpush2.msra.mxu0 0.0
    %1886 = vmatprep.subr.mxu0 0.0
    %1887 = vmatpush2.msra.mxu0 0.0
    %1888 = vmatprep.subr.mxu0 0.0
    %1889 = vmatpush2.msra.mxu0 0.0
    %1890 = vmatprep.subr.mxu0 0.0
    %1891 = vmatpush2.msra.mxu0 0.0
    %1892 = vmatprep.subr.mxu0 0.0
    %1893 = vmatpush2.msra.mxu0 0.0
    %1894 = vmatprep.subr.mxu0 0.0
    %1895 = vmatpush2.msra.mxu0 0.0
    %1896 = vmatprep.subr.mxu0 0.0
    %1897 = vmatpush2.msra.mxu0 0.0
    %1898 = vmatprep.subr.mxu0 0.0
    %1899 = vmatpush2.msra.mxu0 0.0
    %1900 = vmatprep.mubr.f32.mxu0 0.0
    %1901 = vmatmul.mubr.f32.gmra.mxu0 %v1749
    %v1902 = vpop.f32.mrf.mxu0
    %v1903 = vadd.f32 0.0, %v1902
    %v1904 = vpop.f32.mrf.mxu0
    %1905 = vdwg.mxu0
    %1906 = vmatprep.subr.mxu0 0.0
    %1907 = vmatpush1.msra.mxu0 %v361
    %1908 = vmatprep.subr.mxu0 0.0
    %1909 = vmatpush1.msra.mxu0 %v360
    %1910 = vmatprep.subr.mxu0 0.0
    %1911 = vmatpush1.msra.mxu0 %v359
    %1912 = vmatprep.subr.mxu0 0.0
    %1913 = vmatpush1.msra.mxu0 %v358
    %1914 = vmatprep.subr.mxu0 0.0
    %1915 = vmatpush1.msra.mxu0 %v357
    %1916 = vmatprep.subr.mxu0 0.0
    %1917 = vmatpush1.msra.mxu0 %v356
    %1918 = vmatprep.subr.mxu0 0.0
    %1919 = vmatpush1.msra.mxu0 %v355
    %1920 = vmatprep.subr.mxu0 0.0
    %1921 = vmatpush1.msra.mxu0 %v354
    %1922 = vmatprep.subr.mxu0 0.0
    %1923 = vmatpush1.msra.mxu0 %v353
    %1924 = vmatprep.subr.mxu0 0.0
    %1925 = vmatpush1.msra.mxu0 %v352
    %1926 = vmatprep.subr.mxu0 0.0
    %1927 = vmatpush1.msra.mxu0 %v351
    %1928 = vmatprep.subr.mxu0 0.0
    %1929 = vmatpush1.msra.mxu0 %v350
    %1930 = vmatprep.subr.mxu0 0.0
    %1931 = vmatpush1.msra.mxu0 %v349
    %1932 = vmatprep.subr.mxu0 0.0
    %1933 = vmatpush1.msra.mxu0 %v348
    %1934 = vmatprep.subr.mxu0 0.0
    %1935 = vmatpush1.msra.mxu0 %v347
    %1936 = vmatprep.subr.mxu0 0.0
    %1937 = vmatpush1.msra.mxu0 %v346
    %1938 = vmatprep.subr.mxu0 0.0
    %1939 = vmatpush2.msra.mxu0 0.0
    %1940 = vmatprep.subr.mxu0 0.0
    %1941 = vmatpush2.msra.mxu0 0.0
    %1942 = vmatprep.subr.mxu0 0.0
    %1943 = vmatpush2.msra.mxu0 0.0
    %1944 = vmatprep.subr.mxu0 0.0
    %1945 = vmatpush2.msra.mxu0 0.0
    %1946 = vmatprep.subr.mxu0 0.0
    %1947 = vmatpush2.msra.mxu0 0.0
    %1948 = vmatprep.subr.mxu0 0.0
    %1949 = vmatpush2.msra.mxu0 0.0
    %1950 = vmatprep.subr.mxu0 0.0
    %1951 = vmatpush2.msra.mxu0 0.0
    %1952 = vmatprep.subr.mxu0 0.0
    %1953 = vmatpush2.msra.mxu0 0.0
    %1954 = vmatprep.subr.mxu0 0.0
    %1955 = vmatpush2.msra.mxu0 0.0
    %1956 = vmatprep.subr.mxu0 0.0
    %1957 = vmatpush2.msra.mxu0 0.0
    %1958 = vmatprep.subr.mxu0 0.0
    %1959 = vmatpush2.msra.mxu0 0.0
    %1960 = vmatprep.subr.mxu0 0.0
    %1961 = vmatpush2.msra.mxu0 0.0
    %1962 = vmatprep.subr.mxu0 0.0
    %1963 = vmatpush2.msra.mxu0 0.0
    %1964 = vmatprep.subr.mxu0 0.0
    %1965 = vmatpush2.msra.mxu0 0.0
    %1966 = vmatprep.subr.mxu0 0.0
    %1967 = vmatpush2.msra.mxu0 0.0
    %1968 = vmatprep.subr.mxu0 0.0
    %1969 = vmatpush2.msra.mxu0 0.0
    %1970 = vmatprep.mubr.f32.mxu0 0.0
    %1971 = vmatmul.mubr.f32.gmra.mxu0 %v1835
    %v1972 = vpop.f32.mrf.mxu0
    %v1973 = vadd.f32 %v1903, %v1972
    %v1974 = vpop.f32.mrf.mxu0
    %1975 = vdwg.mxu0
    %v1976 = vadd.f32 %v1973, %v522
    %v1977 = vmul.f32 %v1976, %v105
    %v1978 = vtanh.pop %v1977
    %v1979 = vmul.f32 %v1978, %v105
    %v1980 = vadd.f32 %v1979, %v106
    %1981 = vrot.lane.b32.xlu0 %v1980, 96
    %v1982 = vpop.permute.xlu0 %1981
    %1983 = vrot.lane.b32.xlu0 %v1980, 64
    %v1984 = vpop.permute.xlu0 %1983
    %1985 = vrot.lane.b32.xlu0 %v1980, 32
    %v1986 = vpop.permute.xlu0 %1985
    %v1987 = vmul.f32 %v1982, %v1747
    %v1988 = vmul.f32 %v1980, %v1984
    %v1989 = vadd.f32 %v1987, %v1988
    %v1990 = vtanh.pop %v1989
    %v1991 = vmul.f32 %v1986, %v1990
    %1992 = vmatprep.subr.mxu0 0.0
    %1993 = vmatpush1.msra.mxu0 %v259
    %1994 = vmatprep.subr.mxu0 0.0
    %1995 = vmatpush1.msra.mxu0 %v258
    %1996 = vmatprep.subr.mxu0 0.0
    %1997 = vmatpush1.msra.mxu0 %v257
    %1998 = vmatprep.subr.mxu0 0.0
    %1999 = vmatpush1.msra.mxu0 %v256
    %2000 = vmatprep.subr.mxu0 0.0
    %2001 = vmatpush1.msra.mxu0 %v255
    %2002 = vmatprep.subr.mxu0 0.0
    %2003 = vmatpush1.msra.mxu0 %v254
    %2004 = vmatprep.subr.mxu0 0.0
    %2005 = vmatpush1.msra.mxu0 %v253
    %2006 = vmatprep.subr.mxu0 0.0
    %2007 = vmatpush1.msra.mxu0 %v252
    %2008 = vmatprep.subr.mxu0 0.0
    %2009 = vmatpush1.msra.mxu0 %v251
    %2010 = vmatprep.subr.mxu0 0.0
    %2011 = vmatpush1.msra.mxu0 %v250
    %2012 = vmatprep.subr.mxu0 0.0
    %2013 = vmatpush1.msra.mxu0 %v249
    %2014 = vmatprep.subr.mxu0 0.0
    %2015 = vmatpush1.msra.mxu0 %v248
    %2016 = vmatprep.subr.mxu0 0.0
    %2017 = vmatpush1.msra.mxu0 %v247
    %2018 = vmatprep.subr.mxu0 0.0
    %2019 = vmatpush1.msra.mxu0 %v246
    %2020 = vmatprep.subr.mxu0 0.0
    %2021 = vmatpush1.msra.mxu0 %v245
    %2022 = vmatprep.subr.mxu0 0.0
    %2023 = vmatpush1.msra.mxu0 %v244
    %2024 = vmatprep.subr.mxu0 0.0
    %2025 = vmatpush2.msra.mxu0 0.0
    %2026 = vmatprep.subr.mxu0 0.0
    %2027 = vmatpush2.msra.mxu0 0.0
    %2028 = vmatprep.subr.mxu0 0.0
    %2029 = vmatpush2.msra.mxu0 0.0
    %2030 = vmatprep.subr.mxu0 0.0
    %2031 = vmatpush2.msra.mxu0 0.0
    %2032 = vmatprep.subr.mxu0 0.0
    %2033 = vmatpush2.msra.mxu0 0.0
    %2034 = vmatprep.subr.mxu0 0.0
    %2035 = vmatpush2.msra.mxu0 0.0
    %2036 = vmatprep.subr.mxu0 0.0
    %2037 = vmatpush2.msra.mxu0 0.0
    %2038 = vmatprep.subr.mxu0 0.0
    %2039 = vmatpush2.msra.mxu0 0.0
    %2040 = vmatprep.subr.mxu0 0.0
    %2041 = vmatpush2.msra.mxu0 0.0
    %2042 = vmatprep.subr.mxu0 0.0
    %2043 = vmatpush2.msra.mxu0 0.0
    %2044 = vmatprep.subr.mxu0 0.0
    %2045 = vmatpush2.msra.mxu0 0.0
    %2046 = vmatprep.subr.mxu0 0.0
    %2047 = vmatpush2.msra.mxu0 0.0
    %2048 = vmatprep.subr.mxu0 0.0
    %2049 = vmatpush2.msra.mxu0 0.0
    %2050 = vmatprep.subr.mxu0 0.0
    %2051 = vmatpush2.msra.mxu0 0.0
    %2052 = vmatprep.subr.mxu0 0.0
    %2053 = vmatpush2.msra.mxu0 0.0
    %2054 = vmatprep.subr.mxu0 0.0
    %2055 = vmatpush2.msra.mxu0 0.0
    %2056 = vmatprep.mubr.f32.mxu0 0.0
    %2057 = vmatmul.mubr.f32.gmra.mxu0 %v1835
    %v2058 = vpop.f32.mrf.mxu0
    %v2059 = vadd.f32 0.0, %v2058
    %v2060 = vpop.f32.mrf.mxu0
    %2061 = vdwg.mxu0
    %v2062 = vadd.f32 %v240, %v2059
    %v2063 = vmul.f32 %v2062, %v105
    %v2064 = vtanh.pop %v2063
    %v2065 = vmul.f32 %v2064, %v105
    %v2066 = vadd.f32 %v2065, %v106
    %2067 = vrot.lane.b32.xlu0 %v2066, 96
    %v2068 = vpop.permute.xlu0 %2067
    %2069 = vrot.lane.b32.xlu0 %v2066, 64
    %v2070 = vpop.permute.xlu0 %2069
    %2071 = vrot.lane.b32.xlu0 %v2066, 32
    %v2072 = vpop.permute.xlu0 %2071
    %v2073 = vmul.f32 %v2068, %v1833
    %v2074 = vmul.f32 %v2066, %v2070
    %v2075 = vadd.f32 %v2073, %v2074
    %v2076 = vtanh.pop %v2075
    %v2077 = vmul.f32 %v2072, %v2076
    %2078 = vmatprep.subr.mxu0 0.0
    %2079 = vmatpush1.msra.mxu0 %v377
    %2080 = vmatprep.subr.mxu0 0.0
    %2081 = vmatpush1.msra.mxu0 %v376
    %2082 = vmatprep.subr.mxu0 0.0
    %2083 = vmatpush1.msra.mxu0 %v375
    %2084 = vmatprep.subr.mxu0 0.0
    %2085 = vmatpush1.msra.mxu0 %v374
    %2086 = vmatprep.subr.mxu0 0.0
    %2087 = vmatpush1.msra.mxu0 %v373
    %2088 = vmatprep.subr.mxu0 0.0
    %2089 = vmatpush1.msra.mxu0 %v372
    %2090 = vmatprep.subr.mxu0 0.0
    %2091 = vmatpush1.msra.mxu0 %v371
    %2092 = vmatprep.subr.mxu0 0.0
    %2093 = vmatpush1.msra.mxu0 %v370
    %2094 = vmatprep.subr.mxu0 0.0
    %2095 = vmatpush1.msra.mxu0 %v369
    %2096 = vmatprep.subr.mxu0 0.0
    %2097 = vmatpush1.msra.mxu0 %v368
    %2098 = vmatprep.subr.mxu0 0.0
    %2099 = vmatpush1.msra.mxu0 %v367
    %2100 = vmatprep.subr.mxu0 0.0
    %2101 = vmatpush1.msra.mxu0 %v366
    %2102 = vmatprep.subr.mxu0 0.0
    %2103 = vmatpush1.msra.mxu0 %v365
    %2104 = vmatprep.subr.mxu0 0.0
    %2105 = vmatpush1.msra.mxu0 %v364
    %2106 = vmatprep.subr.mxu0 0.0
    %2107 = vmatpush1.msra.mxu0 %v363
    %2108 = vmatprep.subr.mxu0 0.0
    %2109 = vmatpush1.msra.mxu0 %v362
    %2110 = vmatprep.subr.mxu0 0.0
    %2111 = vmatpush2.msra.mxu0 0.0
    %2112 = vmatprep.subr.mxu0 0.0
    %2113 = vmatpush2.msra.mxu0 0.0
    %2114 = vmatprep.subr.mxu0 0.0
    %2115 = vmatpush2.msra.mxu0 0.0
    %2116 = vmatprep.subr.mxu0 0.0
    %2117 = vmatpush2.msra.mxu0 0.0
    %2118 = vmatprep.subr.mxu0 0.0
    %2119 = vmatpush2.msra.mxu0 0.0
    %2120 = vmatprep.subr.mxu0 0.0
    %2121 = vmatpush2.msra.mxu0 0.0
    %2122 = vmatprep.subr.mxu0 0.0
    %2123 = vmatpush2.msra.mxu0 0.0
    %2124 = vmatprep.subr.mxu0 0.0
    %2125 = vmatpush2.msra.mxu0 0.0
    %2126 = vmatprep.subr.mxu0 0.0
    %2127 = vmatpush2.msra.mxu0 0.0
    %2128 = vmatprep.subr.mxu0 0.0
    %2129 = vmatpush2.msra.mxu0 0.0
    %2130 = vmatprep.subr.mxu0 0.0
    %2131 = vmatpush2.msra.mxu0 0.0
    %2132 = vmatprep.subr.mxu0 0.0
    %2133 = vmatpush2.msra.mxu0 0.0
    %2134 = vmatprep.subr.mxu0 0.0
    %2135 = vmatpush2.msra.mxu0 0.0
    %2136 = vmatprep.subr.mxu0 0.0
    %2137 = vmatpush2.msra.mxu0 0.0
    %2138 = vmatprep.subr.mxu0 0.0
    %2139 = vmatpush2.msra.mxu0 0.0
    %2140 = vmatprep.subr.mxu0 0.0
    %2141 = vmatpush2.msra.mxu0 0.0
    %2142 = vmatprep.mubr.f32.mxu0 0.0
    %2143 = vmatmul.mubr.f32.gmra.mxu0 %v1991
    %v2144 = vpop.f32.mrf.mxu0
    %v2145 = vadd.f32 0.0, %v2144
    %v2146 = vpop.f32.mrf.mxu0
    %2147 = vdwg.mxu0
    %2148 = vmatprep.subr.mxu0 0.0
    %2149 = vmatpush1.msra.mxu0 %v361
    %2150 = vmatprep.subr.mxu0 0.0
    %2151 = vmatpush1.msra.mxu0 %v360
    %2152 = vmatprep.subr.mxu0 0.0
    %2153 = vmatpush1.msra.mxu0 %v359
    %2154 = vmatprep.subr.mxu0 0.0
    %2155 = vmatpush1.msra.mxu0 %v358
    %2156 = vmatprep.subr.mxu0 0.0
    %2157 = vmatpush1.msra.mxu0 %v357
    %2158 = vmatprep.subr.mxu0 0.0
    %2159 = vmatpush1.msra.mxu0 %v356
    %2160 = vmatprep.subr.mxu0 0.0
    %2161 = vmatpush1.msra.mxu0 %v355
    %2162 = vmatprep.subr.mxu0 0.0
    %2163 = vmatpush1.msra.mxu0 %v354
    %2164 = vmatprep.subr.mxu0 0.0
    %2165 = vmatpush1.msra.mxu0 %v353
    %2166 = vmatprep.subr.mxu0 0.0
    %2167 = vmatpush1.msra.mxu0 %v352
    %2168 = vmatprep.subr.mxu0 0.0
    %2169 = vmatpush1.msra.mxu0 %v351
    %2170 = vmatprep.subr.mxu0 0.0
    %2171 = vmatpush1.msra.mxu0 %v350
    %2172 = vmatprep.subr.mxu0 0.0
    %2173 = vmatpush1.msra.mxu0 %v349
    %2174 = vmatprep.subr.mxu0 0.0
    %2175 = vmatpush1.msra.mxu0 %v348
    %2176 = vmatprep.subr.mxu0 0.0
    %2177 = vmatpush1.msra.mxu0 %v347
    %2178 = vmatprep.subr.mxu0 0.0
    %2179 = vmatpush1.msra.mxu0 %v346
    %2180 = vmatprep.subr.mxu0 0.0
    %2181 = vmatpush2.msra.mxu0 0.0
    %2182 = vmatprep.subr.mxu0 0.0
    %2183 = vmatpush2.msra.mxu0 0.0
    %2184 = vmatprep.subr.mxu0 0.0
    %2185 = vmatpush2.msra.mxu0 0.0
    %2186 = vmatprep.subr.mxu0 0.0
    %2187 = vmatpush2.msra.mxu0 0.0
    %2188 = vmatprep.subr.mxu0 0.0
    %2189 = vmatpush2.msra.mxu0 0.0
    %2190 = vmatprep.subr.mxu0 0.0
    %2191 = vmatpush2.msra.mxu0 0.0
    %2192 = vmatprep.subr.mxu0 0.0
    %2193 = vmatpush2.msra.mxu0 0.0
    %2194 = vmatprep.subr.mxu0 0.0
    %2195 = vmatpush2.msra.mxu0 0.0
    %2196 = vmatprep.subr.mxu0 0.0
    %2197 = vmatpush2.msra.mxu0 0.0
    %2198 = vmatprep.subr.mxu0 0.0
    %2199 = vmatpush2.msra.mxu0 0.0
    %2200 = vmatprep.subr.mxu0 0.0
    %2201 = vmatpush2.msra.mxu0 0.0
    %2202 = vmatprep.subr.mxu0 0.0
    %2203 = vmatpush2.msra.mxu0 0.0
    %2204 = vmatprep.subr.mxu0 0.0
    %2205 = vmatpush2.msra.mxu0 0.0
    %2206 = vmatprep.subr.mxu0 0.0
    %2207 = vmatpush2.msra.mxu0 0.0
    %2208 = vmatprep.subr.mxu0 0.0
    %2209 = vmatpush2.msra.mxu0 0.0
    %2210 = vmatprep.subr.mxu0 0.0
    %2211 = vmatpush2.msra.mxu0 0.0
    %2212 = vmatprep.mubr.f32.mxu0 0.0
    %2213 = vmatmul.mubr.f32.gmra.mxu0 %v2077
    %v2214 = vpop.f32.mrf.mxu0
    %v2215 = vadd.f32 %v2145, %v2214
    %v2216 = vpop.f32.mrf.mxu0
    %2217 = vdwg.mxu0
    %v2218 = vadd.f32 %v2215, %v522
    %v2219 = vmul.f32 %v2218, %v105
    %v2220 = vtanh.pop %v2219
    %v2221 = vmul.f32 %v2220, %v105
    %v2222 = vadd.f32 %v2221, %v106
    %2223 = vrot.lane.b32.xlu0 %v2222, 96
    %v2224 = vpop.permute.xlu0 %2223
    %2225 = vrot.lane.b32.xlu0 %v2222, 64
    %v2226 = vpop.permute.xlu0 %2225
    %2227 = vrot.lane.b32.xlu0 %v2222, 32
    %v2228 = vpop.permute.xlu0 %2227
    %v2229 = vmul.f32 %v2224, %v1989
    %v2230 = vmul.f32 %v2222, %v2226
    %v2231 = vadd.f32 %v2229, %v2230
    %v2232 = vtanh.pop %v2231
    %v2233 = vmul.f32 %v2228, %v2232
    %v2234 = vld [vmem:[#allocation9] sm:$0xff]
    %v2235 = vld [vmem:[#allocation9 + $0x8] sm:$0xff]
    %v2236 = vld [vmem:[#allocation9 + $0x10] sm:$0xff]
    %v2237 = vld [vmem:[#allocation9 + $0x18] sm:$0xff]
    %v2238 = vld [vmem:[#allocation9 + $0x20] sm:$0xff]
    %v2239 = vld [vmem:[#allocation9 + $0x28] sm:$0xff]
    %v2240 = vld [vmem:[#allocation9 + $0x30] sm:$0xff]
    %v2241 = vld [vmem:[#allocation9 + $0x38] sm:$0xff]
    %v2242 = vld [vmem:[#allocation9 + $0x40] sm:$0xff]
    %v2243 = vld [vmem:[#allocation9 + $0x48] sm:$0xff]
    %v2244 = vld [vmem:[#allocation9 + $0x50] sm:$0xff]
    %v2245 = vld [vmem:[#allocation9 + $0x58] sm:$0xff]
    %v2246 = vld [vmem:[#allocation9 + $0x60] sm:$0xff]
    %v2247 = vld [vmem:[#allocation9 + $0x68] sm:$0xff]
    %v2248 = vld [vmem:[#allocation9 + $0x70] sm:$0xff]
    %v2249 = vld [vmem:[#allocation9 + $0x78] sm:$0xff]
    %v2250 = vld [vmem:[%s8] sm:$0x1]
    %v2252 = vlaneseq
    %v2253 = vshrl.u32 %v2252, 7
    %v2254 = vsub.s32 0, %v2253
    %v2255 = vrot.slane %v2250, %v2254
    %2257 = vmatprep.subr.mxu0 0.0
    %2258 = vmatpush1.msra.mxu0 %v2249
    %2259 = vmatprep.subr.mxu0 0.0
    %2260 = vmatpush1.msra.mxu0 %v2248
    %2261 = vmatprep.subr.mxu0 0.0
    %2262 = vmatpush1.msra.mxu0 %v2247
    %2263 = vmatprep.subr.mxu0 0.0
    %2264 = vmatpush1.msra.mxu0 %v2246
    %2265 = vmatprep.subr.mxu0 0.0
    %2266 = vmatpush1.msra.mxu0 %v2245
    %2267 = vmatprep.subr.mxu0 0.0
    %2268 = vmatpush1.msra.mxu0 %v2244
    %2269 = vmatprep.subr.mxu0 0.0
    %2270 = vmatpush1.msra.mxu0 %v2243
    %2271 = vmatprep.subr.mxu0 0.0
    %2272 = vmatpush1.msra.mxu0 %v2242
    %2273 = vmatprep.subr.mxu0 0.0
    %2274 = vmatpush1.msra.mxu0 %v2241
    %2275 = vmatprep.subr.mxu0 0.0
    %2276 = vmatpush1.msra.mxu0 %v2240
    %2277 = vmatprep.subr.mxu0 0.0
    %2278 = vmatpush1.msra.mxu0 %v2239
    %2279 = vmatprep.subr.mxu0 0.0
    %2280 = vmatpush1.msra.mxu0 %v2238
    %2281 = vmatprep.subr.mxu0 0.0
    %2282 = vmatpush1.msra.mxu0 %v2237
    %2283 = vmatprep.subr.mxu0 0.0
    %2284 = vmatpush1.msra.mxu0 %v2236
    %2285 = vmatprep.subr.mxu0 0.0
    %2286 = vmatpush1.msra.mxu0 %v2235
    %2287 = vmatprep.subr.mxu0 0.0
    %2288 = vmatpush1.msra.mxu0 %v2234
    %2289 = vmatprep.subr.mxu0 0.0
    %2290 = vmatpush2.msra.mxu0 0.0
    %2291 = vmatprep.subr.mxu0 0.0
    %2292 = vmatpush2.msra.mxu0 0.0
    %2293 = vmatprep.subr.mxu0 0.0
    %2294 = vmatpush2.msra.mxu0 0.0
    %2295 = vmatprep.subr.mxu0 0.0
    %2296 = vmatpush2.msra.mxu0 0.0
    %2297 = vmatprep.subr.mxu0 0.0
    %2298 = vmatpush2.msra.mxu0 0.0
    %2299 = vmatprep.subr.mxu0 0.0
    %2300 = vmatpush2.msra.mxu0 0.0
    %2301 = vmatprep.subr.mxu0 0.0
    %2302 = vmatpush2.msra.mxu0 0.0
    %2303 = vmatprep.subr.mxu0 0.0
    %2304 = vmatpush2.msra.mxu0 0.0
    %2305 = vmatprep.subr.mxu0 0.0
    %2306 = vmatpush2.msra.mxu0 0.0
    %2307 = vmatprep.subr.mxu0 0.0
    %2308 = vmatpush2.msra.mxu0 0.0
    %2309 = vmatprep.subr.mxu0 0.0
    %2310 = vmatpush2.msra.mxu0 0.0
    %2311 = vmatprep.subr.mxu0 0.0
    %2312 = vmatpush2.msra.mxu0 0.0
    %2313 = vmatprep.subr.mxu0 0.0
    %2314 = vmatpush2.msra.mxu0 0.0
    %2315 = vmatprep.subr.mxu0 0.0
    %2316 = vmatpush2.msra.mxu0 0.0
    %2317 = vmatprep.subr.mxu0 0.0
    %2318 = vmatpush2.msra.mxu0 0.0
    %2319 = vmatprep.subr.mxu0 0.0
    %2320 = vmatpush2.msra.mxu0 0.0
    %2321 = vmatprep.mubr.f32.mxu0 0.0
    %2322 = vmatmul.mubr.f32.gmra.mxu0 %v2233
    %v2323 = vpop.f32.mrf.mxu0
    %v2324 = vadd.f32 %v2255, %v2323
    %v2325 = vpop.f32.mrf.mxu0
    %2326 = vdwg.mxu0
    %2327 = vst [vmem:[%s9] sm:$0xff] %v2324
    // Predicated region
    $region58: #{forward.1} parent=1 // pred_check
      _
    $region59: #{forward.1} parent=1 // pred_check_branch
      %2329 = sbr.rel (0) target = $region61
    $region60: #{forward.1} parent=1 // pred_region
      _
    $region61: #{forward.1} parent=1 // pred_fallthru
      _
    // Predicated region
    $region62: #{forward.1} parent=1 // pred_check
      _
    $region63: #{forward.1} parent=1 // pred_check_branch
      %2331 = sbr.rel (0) target = $region65
    $region64: #{forward.1} parent=1 // pred_region
      _
    $region65: #{forward.1} parent=1 // pred_fallthru
      _
    %2332 = vsyncpa [#allocation3], 1
    %2333 = vsyncpa [#allocation5], 1
    %2334 = vsyncpa [#allocation8], 1

</llo_original>
